<compile_context>
chip_gen: v5e
topology: v5e:2x2
jax: 0.10.0
libtpu: 0.0.40
codegen_flags: <defaults>
</compile_context>

<pallas_src>
import math

import jax
import jax.numpy as jnp
import numpy as np
from jax import lax
from jax.experimental import pallas as pl
from jax.experimental.pallas import tpu as pltpu

SMOOTH = 1e-4


def relative_pos_dis(height: int, width: int):
    """JAX port of the PyTorch helper (meshgrid default 'ij')."""
    ch, cw = jnp.meshgrid(jnp.arange(height), jnp.arange(width), indexing="ij")
    coords_flatten = jnp.stack([ch, cw]).reshape(2, -1)                  # (2, N)
    rel = coords_flatten[:, :, None] - coords_flatten[:, None, :]        # (2, N, N)
    rel = jnp.transpose(rel, (1, 2, 0)).astype(jnp.float32)              # (N, N, 2)
    dis = (rel[:, :, 0] / float(height)) ** 2 + (rel[:, :, 1] / float(width)) ** 2
    return dis                                                           # (N, N)


def make_attention_kernel(num_heads: int, head_size: int, seq: int, hidden: int):
    hs = head_size
    H = hidden

    def kernel(x_ref, wqkv_ref, bqkv_ref, wo_ref, bo_ref, selt_ref, disp_ref,
               out_ref, wpk_ref):
        x = x_ref[0]                                                     # (S, H)

        # One fused QKV projection: (S, H) @ (H, 3H) + (1, 3H)
        qkv = jnp.dot(x, wqkv_ref[...],
                      preferred_element_type=jnp.float32) + bqkv_ref[...]

        q_all = qkv[:, :H]                                               # (S, H)
        k_all = qkv[:, H:2 * H]                                          # (S, H)

        # All-head per-head L2 norms with two selector matmuls (MXU),
        # replacing per-head cross-lane reductions:
        #   qn_all[i, h] = sqrt(sum_{d in head h} q[i, d]^2 + SMOOTH)   (S, nh)
        #   kn_t[h, j]   = sqrt(sum_{d in head h} k[j, d]^2 + SMOOTH)   (nh, S)
        qsq = q_all * q_all
        ksq = k_all * k_all
        qn_all = jnp.sqrt(
            lax.dot_general(qsq, selt_ref[...], (((1,), (1,)), ((), ())),
                            preferred_element_type=jnp.float32) + SMOOTH)  # (S, nh)
        kn_t = jnp.sqrt(
            lax.dot_general(selt_ref[...], ksq, (((1,), (1,)), ((), ())),
                            preferred_element_type=jnp.float32) + SMOOTH)  # (nh, S)

        probs_all = []
        ctx_parts = []
        for h in range(num_heads):                                       # static unroll
            q = qkv[:, h * hs:(h + 1) * hs]                              # (S, hs)
            k = qkv[:, H + h * hs:H + (h + 1) * hs]                      # (S, hs)
            v = qkv[:, 2 * H + h * hs:2 * H + (h + 1) * hs]              # (S, hs)

            # scores[i, j] = sum_d q[i, d] * k[j, d]   -> (S, S), no transpose
            scores = lax.dot_general(
                q, k, (((1,), (1,)), ((), ())),
                preferred_element_type=jnp.float32)

            # broadcast outer product (S,1)*(1,S) -- no MXU, no transpose
            qk_norm = qn_all[:, h:h + 1] * kn_t[h:h + 1, :] + SMOOTH     # (S, S)

            # prior already exp'd / row-normalized in the wrapper
            probs = (scores / qk_norm) * disp_ref[h]                     # (S, S)
            probs_all.append(probs)

            # attn_dropout == identity (eval mode / rate 0.0)
            ctx_parts.append(jnp.dot(probs, v,
                                     preferred_element_type=jnp.float32))

        # lane-dense store: all heads packed along lanes -> (S, nh*S) = (64, 256)
        wpk_ref[0] = jnp.concatenate(probs_all, axis=-1)

        # Fused output projection: (S, H) @ (H, H) + (1, H)
        ctx = jnp.concatenate(ctx_parts, axis=-1)                        # (S, H)
        out_ref[0] = jnp.dot(ctx, wo_ref[...],
                             preferred_element_type=jnp.float32) + bo_ref[...]
        # proj_dropout == identity (eval mode / rate 0.0)

    return kernel


def attention_forward(x, wq, wk, wv, wo, bq, bk, bv, bo, headsita, dis,
                      num_heads: int):
    """x: (B, S, H). Weights in (in, out) convention: y = x @ W + b."""
    B, S, H = x.shape
    hs = H // num_heads

    # ---- glue (all input-invariant w.r.t. x; computed once outside kernel) ----
    wqkv = jnp.concatenate([wq, wk, wv], axis=1)                 # (H, 3H)
    bqkv = jnp.concatenate([bq, bk, bv], axis=0).reshape(1, 3 * H)
    bo_r = bo.reshape(1, H)

    # per-head selector: selT[h, d] = 1 iff column d belongs to head h
    selT = (jnp.arange(H)[None, :] // hs
            == jnp.arange(num_heads)[:, None]).astype(jnp.float32)   # (nh, H)

    # hoisted distance prior: exp(-factor*dis), row-normalized  -> (nh, S, S)
    factor = 1.0 / (2.0 * (jax.nn.sigmoid(headsita) * (0.4 - 0.003) + 0.003) ** 2)
    dis_prior = jnp.exp(-factor.astype(jnp.float32)[:, None, None] * dis[None])
    dis_prior = dis_prior / jnp.sum(dis_prior, axis=-1, keepdims=True)
    dis_prior = dis_prior.astype(jnp.float32)

    kernel = make_attention_kernel(num_heads, hs, S, H)

    full = lambda shape: pl.BlockSpec(shape, lambda b: (0,) * len(shape))

    out, w_packed = pl.pallas_call(
        kernel,
        out_shape=(
            jax.ShapeDtypeStruct((B, S, H), jnp.float32),
            jax.ShapeDtypeStruct((B, S, num_heads * S), jnp.float32),
        ),
        grid=(B,),
        in_specs=[
            pl.BlockSpec((1, S, H), lambda b: (b, 0, 0)),        # x
            full((H, 3 * H)),                                    # fused W_qkv
            full((1, 3 * H)),                                    # fused b_qkv
            full((H, H)),                                        # wo
            full((1, H)),                                        # bo
            full((num_heads, H)),                                # head selector
            full((num_heads, S, S)),                             # distance prior
        ],
        out_specs=[
            pl.BlockSpec((1, S, H), lambda b: (b, 0, 0)),
            pl.BlockSpec((1, S, num_heads * S), lambda b: (b, 0, 0)),
        ],
        compiler_params=pltpu.CompilerParams(
            dimension_semantics=("parallel",)),                  # B=2 -> 2 TCs on v7x
    )(x, wqkv, bqkv, wo, bo_r, selT, dis_prior)

    # unpack head-packed weights back to (B, nh, S, S)
    weights = w_packed.reshape(B, S, num_heads, S)
    weights = jnp.transpose(weights, (0, 2, 1, 3))
    return out, weights


def reference_forward(x, wq, wk, wv, wo, bq, bk, bv, bo, headsita, dis, num_heads):
    """Pure-JAX reference mirroring the PyTorch forward exactly."""
    B, S, H = x.shape
    hs = H // num_heads
    q = (x @ wq + bq).reshape(B, S, num_heads, hs).transpose(0, 2, 1, 3)
    k = (x @ wk + bk).reshape(B, S, num_heads, hs).transpose(0, 2, 1, 3)
    v = (x @ wv + bv).reshape(B, S, num_heads, hs).transpose(0, 2, 1, 3)
    scores = jnp.einsum("bhqd,bhkd->bhqk", q, k)
    qn = jnp.sqrt(jnp.sum(q ** 2, -1) + SMOOTH)
    kn = jnp.sqrt(jnp.sum(k ** 2, -1) + SMOOTH)
    qk_norm = qn[:, :, :, None] * kn[:, :, None, :] + SMOOTH
    probs = scores / qk_norm
    factor = 1.0 / (2.0 * (jax.nn.sigmoid(headsita) * (0.4 - 0.003) + 0.003) ** 2)
    d = jnp.exp(-factor[:, None, None] * dis[None])
    d = d / jnp.sum(d, -1, keepdims=True)
    probs = probs * d[None]
    weights = probs
    ctx = jnp.einsum("bhqk,bhkd->bhqd", probs, v).transpose(0, 2, 1, 3).reshape(B, S, H)
    out = ctx @ wo + bo
    return out, weights


if __name__ == "__main__":
    # config: hidden_size=32, num_heads=4, num_patches=64 (8x8 grid), batch=2
    B, H, NH, NP = 2, 32, 4, 64
    S = NP
    side = int(math.sqrt(NP))

    key = jax.random.PRNGKey(0)
    ks = jax.random.split(key, 10)
    x = jax.random.normal(ks[0], (B, S, H), jnp.float32)
    wq = jax.random.normal(ks[1], (H, H), jnp.float32) * 0.05
    wk = jax.random.normal(ks[2], (H, H), jnp.float32) * 0.05
    wv = jax.random.normal(ks[3], (H, H), jnp.float32) * 0.05
    wo = jax.random.normal(ks[4], (H, H), jnp.float32) * 0.05
    bq = jax.random.normal(ks[5], (H,), jnp.float32) * 0.01
    bk = jax.random.normal(ks[6], (H,), jnp.float32) * 0.01
    bv = jax.random.normal(ks[7], (H,), jnp.float32) * 0.01
    bo = jax.random.normal(ks[8], (H,), jnp.float32) * 0.01
    headsita = jax.random.normal(ks[9], (NH,), jnp.float32)

    dis = relative_pos_dis(side, side)        # (S, S)

    out, weights = attention_forward(
        x, wq, wk, wv, wo, bq, bk, bv, bo, headsita, dis, num_heads=NH)
    jax.block_until_ready((out, weights))

    ref_out, ref_w = reference_forward(
        x, wq, wk, wv, wo, bq, bk, bv, bo, headsita, dis, num_heads=NH)

    np.testing.assert_allclose(np.asarray(out), np.asarray(ref_out),
                               rtol=2e-3, atol=2e-3)
    np.testing.assert_allclose(np.asarray(weights), np.asarray(ref_w),
                               rtol=2e-3, atol=2e-3)
    print("KERNEL_OK")
</pallas_src>

<mosaic_0001>
module attributes {stable_mosaic.version = 11 : i64} {
  func.func @kernel(%arg0: i32, %arg1: memref<1x64x32xf32, #tpu.memory_space<vmem>>, %arg2: memref<32x96xf32, #tpu.memory_space<vmem>>, %arg3: memref<1x96xf32, #tpu.memory_space<vmem>>, %arg4: memref<32x32xf32, #tpu.memory_space<vmem>>, %arg5: memref<1x32xf32, #tpu.memory_space<vmem>>, %arg6: memref<4x32xf32, #tpu.memory_space<vmem>>, %arg7: memref<4x64x64xf32, #tpu.memory_space<vmem>>, %arg8: memref<1x64x32xf32, #tpu.memory_space<vmem>>, %arg9: memref<1x64x256xf32, #tpu.memory_space<vmem>>) attributes {dimension_semantics = [#tpu.dimension_semantics<parallel>], iteration_bounds = array<i64: 2>, scalar_prefetch = 0 : i64, scratch_operands = 0 : i64, tpu.core_type = #tpu.core_type<tc>, window_params = [{transform_indices = @transform_0, window_bounds = array<i64: 1, 64, 32>}, {pipeline_mode = #tpu.pipeline_mode<synchronous>, transform_indices = @transform_1, window_bounds = array<i64: 32, 96>}, {pipeline_mode = #tpu.pipeline_mode<synchronous>, transform_indices = @transform_2, window_bounds = array<i64: 1, 96>}, {pipeline_mode = #tpu.pipeline_mode<synchronous>, transform_indices = @transform_3, window_bounds = array<i64: 32, 32>}, {pipeline_mode = #tpu.pipeline_mode<synchronous>, transform_indices = @transform_4, window_bounds = array<i64: 1, 32>}, {pipeline_mode = #tpu.pipeline_mode<synchronous>, transform_indices = @transform_5, window_bounds = array<i64: 4, 32>}, {pipeline_mode = #tpu.pipeline_mode<synchronous>, transform_indices = @transform_6, window_bounds = array<i64: 4, 64, 64>}, {transform_indices = @transform_7, window_bounds = array<i64: 1, 64, 32>}, {transform_indices = @transform_8, window_bounds = array<i64: 1, 64, 256>}]} {
    %c0 = arith.constant 0 : index
    %c0_0 = arith.constant 0 : index
    %c0_1 = arith.constant 0 : index
    %0 = vector.load %arg1[%c0, %c0_0, %c0_1] : memref<1x64x32xf32, #tpu.memory_space<vmem>>, vector<1x64x32xf32>
    %1 = vector.shape_cast %0 : vector<1x64x32xf32> to vector<64x32xf32>
    %c0_2 = arith.constant 0 : index
    %c0_3 = arith.constant 0 : index
    %2 = vector.load %arg2[%c0_2, %c0_3] : memref<32x96xf32, #tpu.memory_space<vmem>>, vector<32x96xf32>
    %cst = arith.constant dense<0.000000e+00> : vector<64x96xf32>
    %3 = tpu.matmul %1, %2, %cst {dimension_numbers = #tpu.dot_dimension_numbers<[1], [0], [0], [1], [0, 0, 1, 1], [], []>} : vector<64x32xf32>, vector<32x96xf32>, vector<64x96xf32> -> vector<64x96xf32>
    %c0_4 = arith.constant 0 : index
    %c0_5 = arith.constant 0 : index
    %4 = vector.load %arg3[%c0_4, %c0_5] : memref<1x96xf32, #tpu.memory_space<vmem>>, vector<1x96xf32>
    %5 = vector.broadcast %4 : vector<1x96xf32> to vector<64x96xf32>
    %6 = arith.addf %3, %5 : vector<64x96xf32>
    %7 = vector.extract_strided_slice %6 {offsets = [0, 0], sizes = [64, 32], strides = [1, 1]} : vector<64x96xf32> to vector<64x32xf32>
    %8 = vector.extract_strided_slice %6 {offsets = [0, 32], sizes = [64, 32], strides = [1, 1]} : vector<64x96xf32> to vector<64x32xf32>
    %9 = arith.mulf %7, %7 : vector<64x32xf32>
    %10 = arith.mulf %8, %8 : vector<64x32xf32>
    %c0_6 = arith.constant 0 : index
    %c0_7 = arith.constant 0 : index
    %11 = vector.load %arg6[%c0_6, %c0_7] : memref<4x32xf32, #tpu.memory_space<vmem>>, vector<4x32xf32>
    %cst_8 = arith.constant dense<0.000000e+00> : vector<64x4xf32>
    %12 = tpu.matmul %9, %11, %cst_8 {dimension_numbers = #tpu.dot_dimension_numbers<[1], [1], [0], [0], [0, 0, 1, 0], [], []>} : vector<64x32xf32>, vector<4x32xf32>, vector<64x4xf32> -> vector<64x4xf32>
    %cst_9 = arith.constant 9.99999974E-5 : f32
    %13 = vector.broadcast %cst_9 : f32 to vector<64x4xf32>
    %14 = arith.addf %12, %13 : vector<64x4xf32>
    %15 = math.sqrt %14 : vector<64x4xf32>
    %c0_10 = arith.constant 0 : index
    %c0_11 = arith.constant 0 : index
    %16 = vector.load %arg6[%c0_10, %c0_11] : memref<4x32xf32, #tpu.memory_space<vmem>>, vector<4x32xf32>
    %cst_12 = arith.constant dense<0.000000e+00> : vector<4x64xf32>
    %17 = tpu.matmul %16, %10, %cst_12 {dimension_numbers = #tpu.dot_dimension_numbers<[1], [1], [0], [0], [0, 0, 1, 0], [], []>} : vector<4x32xf32>, vector<64x32xf32>, vector<4x64xf32> -> vector<4x64xf32>
    %cst_13 = arith.constant 9.99999974E-5 : f32
    %18 = vector.broadcast %cst_13 : f32 to vector<4x64xf32>
    %19 = arith.addf %17, %18 : vector<4x64xf32>
    %20 = math.sqrt %19 : vector<4x64xf32>
    %21 = vector.extract_strided_slice %6 {offsets = [0, 0], sizes = [64, 8], strides = [1, 1]} : vector<64x96xf32> to vector<64x8xf32>
    %22 = vector.extract_strided_slice %6 {offsets = [0, 32], sizes = [64, 8], strides = [1, 1]} : vector<64x96xf32> to vector<64x8xf32>
    %23 = vector.extract_strided_slice %6 {offsets = [0, 64], sizes = [64, 8], strides = [1, 1]} : vector<64x96xf32> to vector<64x8xf32>
    %cst_14 = arith.constant dense<0.000000e+00> : vector<64x64xf32>
    %24 = tpu.matmul %21, %22, %cst_14 {dimension_numbers = #tpu.dot_dimension_numbers<[1], [1], [0], [0], [0, 0, 1, 0], [], []>} : vector<64x8xf32>, vector<64x8xf32>, vector<64x64xf32> -> vector<64x64xf32>
    %25 = vector.extract_strided_slice %15 {offsets = [0, 0], sizes = [64, 1], strides = [1, 1]} : vector<64x4xf32> to vector<64x1xf32>
    %26 = vector.extract_strided_slice %20 {offsets = [0, 0], sizes = [1, 64], strides = [1, 1]} : vector<4x64xf32> to vector<1x64xf32>
    %27 = vector.broadcast %25 : vector<64x1xf32> to vector<64x64xf32>
    %28 = vector.broadcast %26 : vector<1x64xf32> to vector<64x64xf32>
    %29 = arith.mulf %27, %28 : vector<64x64xf32>
    %cst_15 = arith.constant 9.99999974E-5 : f32
    %30 = vector.broadcast %cst_15 : f32 to vector<64x64xf32>
    %31 = arith.addf %29, %30 : vector<64x64xf32>
    %32 = arith.divf %24, %31 : vector<64x64xf32>
    %c0_16 = arith.constant 0 : index
    %c0_17 = arith.constant 0 : index
    %c0_18 = arith.constant 0 : index
    %33 = vector.load %arg7[%c0_16, %c0_17, %c0_18] : memref<4x64x64xf32, #tpu.memory_space<vmem>>, vector<1x64x64xf32>
    %34 = vector.shape_cast %33 : vector<1x64x64xf32> to vector<64x64xf32>
    %35 = arith.mulf %32, %34 : vector<64x64xf32>
    %cst_19 = arith.constant dense<0.000000e+00> : vector<64x8xf32>
    %36 = tpu.matmul %35, %23, %cst_19 {dimension_numbers = #tpu.dot_dimension_numbers<[1], [0], [0], [1], [0, 0, 1, 1], [], []>} : vector<64x64xf32>, vector<64x8xf32>, vector<64x8xf32> -> vector<64x8xf32>
    %37 = vector.extract_strided_slice %6 {offsets = [0, 8], sizes = [64, 8], strides = [1, 1]} : vector<64x96xf32> to vector<64x8xf32>
    %38 = vector.extract_strided_slice %6 {offsets = [0, 40], sizes = [64, 8], strides = [1, 1]} : vector<64x96xf32> to vector<64x8xf32>
    %39 = vector.extract_strided_slice %6 {offsets = [0, 72], sizes = [64, 8], strides = [1, 1]} : vector<64x96xf32> to vector<64x8xf32>
    %cst_20 = arith.constant dense<0.000000e+00> : vector<64x64xf32>
    %40 = tpu.matmul %37, %38, %cst_20 {dimension_numbers = #tpu.dot_dimension_numbers<[1], [1], [0], [0], [0, 0, 1, 0], [], []>} : vector<64x8xf32>, vector<64x8xf32>, vector<64x64xf32> -> vector<64x64xf32>
    %41 = vector.extract_strided_slice %15 {offsets = [0, 1], sizes = [64, 1], strides = [1, 1]} : vector<64x4xf32> to vector<64x1xf32>
    %42 = vector.extract_strided_slice %20 {offsets = [1, 0], sizes = [1, 64], strides = [1, 1]} : vector<4x64xf32> to vector<1x64xf32>
    %43 = vector.broadcast %41 : vector<64x1xf32> to vector<64x64xf32>
    %44 = vector.broadcast %42 : vector<1x64xf32> to vector<64x64xf32>
    %45 = arith.mulf %43, %44 : vector<64x64xf32>
    %cst_21 = arith.constant 9.99999974E-5 : f32
    %46 = vector.broadcast %cst_21 : f32 to vector<64x64xf32>
    %47 = arith.addf %45, %46 : vector<64x64xf32>
    %48 = arith.divf %40, %47 : vector<64x64xf32>
    %c1 = arith.constant 1 : index
    %c0_22 = arith.constant 0 : index
    %c0_23 = arith.constant 0 : index
    %49 = vector.load %arg7[%c1, %c0_22, %c0_23] : memref<4x64x64xf32, #tpu.memory_space<vmem>>, vector<1x64x64xf32>
    %50 = vector.shape_cast %49 : vector<1x64x64xf32> to vector<64x64xf32>
    %51 = arith.mulf %48, %50 : vector<64x64xf32>
    %cst_24 = arith.constant dense<0.000000e+00> : vector<64x8xf32>
    %52 = tpu.matmul %51, %39, %cst_24 {dimension_numbers = #tpu.dot_dimension_numbers<[1], [0], [0], [1], [0, 0, 1, 1], [], []>} : vector<64x64xf32>, vector<64x8xf32>, vector<64x8xf32> -> vector<64x8xf32>
    %53 = vector.extract_strided_slice %6 {offsets = [0, 16], sizes = [64, 8], strides = [1, 1]} : vector<64x96xf32> to vector<64x8xf32>
    %54 = vector.extract_strided_slice %6 {offsets = [0, 48], sizes = [64, 8], strides = [1, 1]} : vector<64x96xf32> to vector<64x8xf32>
    %55 = vector.extract_strided_slice %6 {offsets = [0, 80], sizes = [64, 8], strides = [1, 1]} : vector<64x96xf32> to vector<64x8xf32>
    %cst_25 = arith.constant dense<0.000000e+00> : vector<64x64xf32>
    %56 = tpu.matmul %53, %54, %cst_25 {dimension_numbers = #tpu.dot_dimension_numbers<[1], [1], [0], [0], [0, 0, 1, 0], [], []>} : vector<64x8xf32>, vector<64x8xf32>, vector<64x64xf32> -> vector<64x64xf32>
    %57 = vector.extract_strided_slice %15 {offsets = [0, 2], sizes = [64, 1], strides = [1, 1]} : vector<64x4xf32> to vector<64x1xf32>
    %58 = vector.extract_strided_slice %20 {offsets = [2, 0], sizes = [1, 64], strides = [1, 1]} : vector<4x64xf32> to vector<1x64xf32>
    %59 = vector.broadcast %57 : vector<64x1xf32> to vector<64x64xf32>
    %60 = vector.broadcast %58 : vector<1x64xf32> to vector<64x64xf32>
    %61 = arith.mulf %59, %60 : vector<64x64xf32>
    %cst_26 = arith.constant 9.99999974E-5 : f32
    %62 = vector.broadcast %cst_26 : f32 to vector<64x64xf32>
    %63 = arith.addf %61, %62 : vector<64x64xf32>
    %64 = arith.divf %56, %63 : vector<64x64xf32>
    %c2 = arith.constant 2 : index
    %c0_27 = arith.constant 0 : index
    %c0_28 = arith.constant 0 : index
    %65 = vector.load %arg7[%c2, %c0_27, %c0_28] : memref<4x64x64xf32, #tpu.memory_space<vmem>>, vector<1x64x64xf32>
    %66 = vector.shape_cast %65 : vector<1x64x64xf32> to vector<64x64xf32>
    %67 = arith.mulf %64, %66 : vector<64x64xf32>
    %cst_29 = arith.constant dense<0.000000e+00> : vector<64x8xf32>
    %68 = tpu.matmul %67, %55, %cst_29 {dimension_numbers = #tpu.dot_dimension_numbers<[1], [0], [0], [1], [0, 0, 1, 1], [], []>} : vector<64x64xf32>, vector<64x8xf32>, vector<64x8xf32> -> vector<64x8xf32>
    %69 = vector.extract_strided_slice %6 {offsets = [0, 24], sizes = [64, 8], strides = [1, 1]} : vector<64x96xf32> to vector<64x8xf32>
    %70 = vector.extract_strided_slice %6 {offsets = [0, 56], sizes = [64, 8], strides = [1, 1]} : vector<64x96xf32> to vector<64x8xf32>
    %71 = vector.extract_strided_slice %6 {offsets = [0, 88], sizes = [64, 8], strides = [1, 1]} : vector<64x96xf32> to vector<64x8xf32>
    %cst_30 = arith.constant dense<0.000000e+00> : vector<64x64xf32>
    %72 = tpu.matmul %69, %70, %cst_30 {dimension_numbers = #tpu.dot_dimension_numbers<[1], [1], [0], [0], [0, 0, 1, 0], [], []>} : vector<64x8xf32>, vector<64x8xf32>, vector<64x64xf32> -> vector<64x64xf32>
    %73 = vector.extract_strided_slice %15 {offsets = [0, 3], sizes = [64, 1], strides = [1, 1]} : vector<64x4xf32> to vector<64x1xf32>
    %74 = vector.extract_strided_slice %20 {offsets = [3, 0], sizes = [1, 64], strides = [1, 1]} : vector<4x64xf32> to vector<1x64xf32>
    %75 = vector.broadcast %73 : vector<64x1xf32> to vector<64x64xf32>
    %76 = vector.broadcast %74 : vector<1x64xf32> to vector<64x64xf32>
    %77 = arith.mulf %75, %76 : vector<64x64xf32>
    %cst_31 = arith.constant 9.99999974E-5 : f32
    %78 = vector.broadcast %cst_31 : f32 to vector<64x64xf32>
    %79 = arith.addf %77, %78 : vector<64x64xf32>
    %80 = arith.divf %72, %79 : vector<64x64xf32>
    %c3 = arith.constant 3 : index
    %c0_32 = arith.constant 0 : index
    %c0_33 = arith.constant 0 : index
    %81 = vector.load %arg7[%c3, %c0_32, %c0_33] : memref<4x64x64xf32, #tpu.memory_space<vmem>>, vector<1x64x64xf32>
    %82 = vector.shape_cast %81 : vector<1x64x64xf32> to vector<64x64xf32>
    %83 = arith.mulf %80, %82 : vector<64x64xf32>
    %cst_34 = arith.constant dense<0.000000e+00> : vector<64x8xf32>
    %84 = tpu.matmul %83, %71, %cst_34 {dimension_numbers = #tpu.dot_dimension_numbers<[1], [0], [0], [1], [0, 0, 1, 1], [], []>} : vector<64x64xf32>, vector<64x8xf32>, vector<64x8xf32> -> vector<64x8xf32>
    %85 = tpu.concatenate %35, %51, %67, %83 in 1 : vector<64x64xf32>, vector<64x64xf32>, vector<64x64xf32>, vector<64x64xf32> -> vector<64x256xf32>
    %c0_35 = arith.constant 0 : index
    %c0_36 = arith.constant 0 : index
    %c0_37 = arith.constant 0 : index
    %86 = vector.load %arg9[%c0_35, %c0_36, %c0_37] : memref<1x64x256xf32, #tpu.memory_space<vmem>>, vector<1x64x256xf32>
    %87 = vector.shape_cast %86 : vector<1x64x256xf32> to vector<64x256xf32>
    %88 = vector.shape_cast %85 : vector<64x256xf32> to vector<1x64x256xf32>
    tpu.vector_store %arg9[%c0_35, %c0_36, %c0_37], %88 {strides = array<i32>} : memref<1x64x256xf32, #tpu.memory_space<vmem>>, vector<1x64x256xf32>,
    %89 = tpu.concatenate %36, %52, %68, %84 in 1 : vector<64x8xf32>, vector<64x8xf32>, vector<64x8xf32>, vector<64x8xf32> -> vector<64x32xf32>
    %c0_38 = arith.constant 0 : index
    %c0_39 = arith.constant 0 : index
    %90 = vector.load %arg4[%c0_38, %c0_39] : memref<32x32xf32, #tpu.memory_space<vmem>>, vector<32x32xf32>
    %cst_40 = arith.constant dense<0.000000e+00> : vector<64x32xf32>
    %91 = tpu.matmul %89, %90, %cst_40 {dimension_numbers = #tpu.dot_dimension_numbers<[1], [0], [0], [1], [0, 0, 1, 1], [], []>} : vector<64x32xf32>, vector<32x32xf32>, vector<64x32xf32> -> vector<64x32xf32>
    %c0_41 = arith.constant 0 : index
    %c0_42 = arith.constant 0 : index
    %92 = vector.load %arg5[%c0_41, %c0_42] : memref<1x32xf32, #tpu.memory_space<vmem>>, vector<1x32xf32>
    %93 = vector.broadcast %92 : vector<1x32xf32> to vector<64x32xf32>
    %94 = arith.addf %91, %93 : vector<64x32xf32>
    %c0_43 = arith.constant 0 : index
    %c0_44 = arith.constant 0 : index
    %c0_45 = arith.constant 0 : index
    %95 = vector.load %arg8[%c0_43, %c0_44, %c0_45] : memref<1x64x32xf32, #tpu.memory_space<vmem>>, vector<1x64x32xf32>
    %96 = vector.shape_cast %95 : vector<1x64x32xf32> to vector<64x32xf32>
    %97 = vector.shape_cast %94 : vector<64x32xf32> to vector<1x64x32xf32>
    tpu.vector_store %arg8[%c0_43, %c0_44, %c0_45], %97 {strides = array<i32>} : memref<1x64x32xf32, #tpu.memory_space<vmem>>, vector<1x64x32xf32>,
    return
  }
  func.func @transform_0(%arg0: i32) -> (i32, i32, i32) {
    %c0_i32 = arith.constant 0 : i32
    %c0_i32_0 = arith.constant 0 : i32
    %c0_i32_1 = arith.constant 0 : i32
    return %arg0, %c0_i32, %c0_i32_0 : i32, i32, i32
  }
  func.func @transform_1(%arg0: i32) -> (i32, i32) {
    %c0_i32 = arith.constant 0 : i32
    %c0_i32_0 = arith.constant 0 : i32
    %c0_i32_1 = arith.constant 0 : i32
    return %c0_i32, %c0_i32_0 : i32, i32
  }
  func.func @transform_2(%arg0: i32) -> (i32, i32) {
    %c0_i32 = arith.constant 0 : i32
    %c0_i32_0 = arith.constant 0 : i32
    %c0_i32_1 = arith.constant 0 : i32
    return %c0_i32, %c0_i32_0 : i32, i32
  }
  func.func @transform_3(%arg0: i32) -> (i32, i32) {
    %c0_i32 = arith.constant 0 : i32
    %c0_i32_0 = arith.constant 0 : i32
    %c0_i32_1 = arith.constant 0 : i32
    return %c0_i32, %c0_i32_0 : i32, i32
  }
  func.func @transform_4(%arg0: i32) -> (i32, i32) {
    %c0_i32 = arith.constant 0 : i32
    %c0_i32_0 = arith.constant 0 : i32
    %c0_i32_1 = arith.constant 0 : i32
    return %c0_i32, %c0_i32_0 : i32, i32
  }
  func.func @transform_5(%arg0: i32) -> (i32, i32) {
    %c0_i32 = arith.constant 0 : i32
    %c0_i32_0 = arith.constant 0 : i32
    %c0_i32_1 = arith.constant 0 : i32
    return %c0_i32, %c0_i32_0 : i32, i32
  }
  func.func @transform_6(%arg0: i32) -> (i32, i32, i32) {
    %c0_i32 = arith.constant 0 : i32
    %c0_i32_0 = arith.constant 0 : i32
    %c0_i32_1 = arith.constant 0 : i32
    %c0_i32_2 = arith.constant 0 : i32
    return %c0_i32, %c0_i32_0, %c0_i32_1 : i32, i32, i32
  }
  func.func @transform_7(%arg0: i32) -> (i32, i32, i32) {
    %c0_i32 = arith.constant 0 : i32
    %c0_i32_0 = arith.constant 0 : i32
    %c0_i32_1 = arith.constant 0 : i32
    return %arg0, %c0_i32, %c0_i32_0 : i32, i32, i32
  }
  func.func @transform_8(%arg0: i32) -> (i32, i32, i32) {
    %c0_i32 = arith.constant 0 : i32
    %c0_i32_0 = arith.constant 0 : i32
    %c0_i32_1 = arith.constant 0 : i32
    return %arg0, %c0_i32, %c0_i32_0 : i32, i32, i32
  }
}

</mosaic_0001>

<llo_original>
// kernel: tpu_custom_call.1
$region0: #{tpu_custom_call.1}
  #allocation0 [shape = 'u32[]', space=smem, size = 0x4, offset = 0x4, fixed_abs, tag = 'smem constant byte address 0x4 - core index']
  #allocation1 [shape = 'u32[72,128]{1,0:T(1,128)}', space=vmem, size = 0x9000, scoped, tag = 'internal scratch']
  %s0 = inlined_call_operand.vmem [shape: f32[2,64,32], index: 0, kind: input, shape index: {}]
  %s1 = inlined_call_operand.vmem [shape: f32[32,96], index: 1, kind: input, shape index: {}]
  %s2 = inlined_call_operand.vmem [shape: f32[1,96], index: 2, kind: input, shape index: {}]
  %s3 = inlined_call_operand.vmem [shape: f32[32,32], index: 3, kind: input, shape index: {}]
  %s4 = inlined_call_operand.vmem [shape: f32[1,32], index: 4, kind: input, shape index: {}]
  %s5 = inlined_call_operand.vmem [shape: f32[4,32], index: 5, kind: input, shape index: {}]
  %s6 = inlined_call_operand.hbm [shape: f32[4,64,64], index: 6, kind: input, shape index: {}]
  %s7 = inlined_call_operand.vmem [shape: f32[2,64,32], index: 7, kind: output, shape index: {0}]
  %s8 = inlined_call_operand.hbm [shape: f32[2,64,256], index: 8, kind: output, shape index: {1}]
  %9 = xla_tuple %s7, %s8
  %s10 = sld [smem:[#allocation0]]
  $region73: #{tpu_custom_call.1} parent=0
    _
  %s12 = ssub.s32 1, %s10
  %s13 = scalar_select 0, %s12, %s10
  $region1: #{tpu_custom_call.1} parent=0
    #allocation2 [shape = 'u8[131072]{0}', space=vmem, size = 0x20000, scoped, tag = 'input window, operand 6, single buffered']
    #allocation3 [shape = 's32[2]{0}', space=sflag, size = 0x8, scoped, tag = 'scoped memory for tpu_custom_call.1']
    #allocation4 [shape = 's32[2]{0}', space=sflag, size = 0x8, scoped, tag = 'scoped memory for tpu_custom_call.1']
    #allocation5 [shape = 'u8[131072]{0}', space=vmem, size = 0x20000, scoped, tag = 'output window, operand 1']
    %14 = vsyncpa [#allocation3], 0
    %15 = vsyncpa [#allocation4], 0
    %s16 = scalar_lea.sflag [#allocation4], 1
    %17 = vsyncpa %s16, 0
    loop: start=0, step=1, limit=4
    $region2: #{tpu_custom_call.1} parent=1 // loop_pre_header
      _
    $region3: #{tpu_custom_call.1} parent=1 // loop_header
      %s19 = sphi 0, %s23
      %p20 = scmp.ge.s32.totalorder %s19, 4
      %s29 = sphi 0, %s31
      %s32 = sphi 0, %s29
      %s33 = sphi 0, %s32
      %s49 = sphi 0, %s33
      %s53 = sphi 0, %s53
      %s55 = sphi 0, %s53
      %s56 = sphi 0, %s55
      %s70 = sphi 0, %s56
      %s74 = sphi 0, %s74
      %s76 = sphi 0, %s74
      %s77 = sphi 0, %s76
      %s91 = sphi 0, %s77
      %s95 = sphi 0, %s95
      %s97 = sphi 0, %s95
      %s98 = sphi 0, %s97
      %s112 = sphi 0, %s98
      %s116 = sphi 0, %s116
      %s118 = sphi 0, %s116
      %s119 = sphi 0, %s118
      %s133 = sphi 0, %s119
      %s137 = sphi 0, %s137
      %s139 = sphi 0, %s137
      %s140 = sphi 0, %s139
      %s154 = sphi 0, %s140
      %s158 = sphi 0, %s158
      %s160 = sphi 0, %s158
      %s161 = sphi 0, %s160
      %s175 = sphi 0, %s161
      %s181 = sphi 0, %s183
      %s184 = sphi 0, %s181
      %s185 = sphi 0, %s184
      %s201 = sphi 0, %s185
      %s207 = sphi 0, %s209
      %s210 = sphi 0, %s207
      %s211 = sphi 0, %s210
      %s227 = sphi 0, %s211
    $region4: #{tpu_custom_call.1} parent=1 // loop_header_branch
      %22 = sbr.rel (%p20) target = $region8
    $region5: #{tpu_custom_call.1} parent=1 // loop_body
      %s24 = ssub.s32 %s19, 1
      %s25 = ssub.s32 %s19, 2
      %s26 = sadd.s32 %s19, 1
      %s27 = ssub.s32 %s19, %s26
      %p28 = scmp.eq.s32.totalorder %s27, 0
      %s30 = sadd.s32 %s29, 1
      %s31 = scalar_select %p28, %s29, %s30
      %p34 = pneg %p28
      %p35 = scmp.eq.s32.totalorder %s19, 1
      %p36 = por %p34, %p35
      %p37 = scmp.ne.s32.totalorder %s29, %s32
      %p38 = scmp.eq.s32.totalorder %s19, 0
      %p39 = por %p37, %p38
      %p40 = scmp.ne.s32.totalorder %s29, %s32
      %p41 = scmp.eq.s32.totalorder %s24, 1
      %p42 = por %p40, %p41
      %p43 = scmp.ne.s32.totalorder %s32, %s33
      %p44 = scmp.eq.s32.totalorder %s24, 0
      %p45 = por %p43, %p44
      %p46 = scmp.ne.s32.totalorder %s32, %s33
      %p47 = scmp.eq.s32.totalorder %s25, 1
      %p48 = por %p46, %p47
      %p50 = scmp.ne.s32.totalorder %s33, %s49
      %p51 = scmp.eq.s32.totalorder %s25, 0
      %p52 = por %p50, %p51
      %s54 = sadd.s32 %s53, 1
      %p57 = scmp.eq.s32.totalorder %s19, 1
      %p58 = scmp.ne.s32.totalorder %s53, %s55
      %p59 = scmp.eq.s32.totalorder %s19, 0
      %p60 = por %p58, %p59
      %p61 = scmp.ne.s32.totalorder %s53, %s55
      %p62 = scmp.eq.s32.totalorder %s24, 1
      %p63 = por %p61, %p62
      %p64 = scmp.ne.s32.totalorder %s55, %s56
      %p65 = scmp.eq.s32.totalorder %s24, 0
      %p66 = por %p64, %p65
      %p67 = scmp.ne.s32.totalorder %s55, %s56
      %p68 = scmp.eq.s32.totalorder %s25, 1
      %p69 = por %p67, %p68
      %p71 = scmp.ne.s32.totalorder %s56, %s70
      %p72 = scmp.eq.s32.totalorder %s25, 0
      %p73 = por %p71, %p72
      %s75 = sadd.s32 %s74, 1
      %p78 = scmp.eq.s32.totalorder %s19, 1
      %p79 = scmp.ne.s32.totalorder %s74, %s76
      %p80 = scmp.eq.s32.totalorder %s19, 0
      %p81 = por %p79, %p80
      %p82 = scmp.ne.s32.totalorder %s74, %s76
      %p83 = scmp.eq.s32.totalorder %s24, 1
      %p84 = por %p82, %p83
      %p85 = scmp.ne.s32.totalorder %s76, %s77
      %p86 = scmp.eq.s32.totalorder %s24, 0
      %p87 = por %p85, %p86
      %p88 = scmp.ne.s32.totalorder %s76, %s77
      %p89 = scmp.eq.s32.totalorder %s25, 1
      %p90 = por %p88, %p89
      %p92 = scmp.ne.s32.totalorder %s77, %s91
      %p93 = scmp.eq.s32.totalorder %s25, 0
      %p94 = por %p92, %p93
      %s96 = sadd.s32 %s95, 1
      %p99 = scmp.eq.s32.totalorder %s19, 1
      %p100 = scmp.ne.s32.totalorder %s95, %s97
      %p101 = scmp.eq.s32.totalorder %s19, 0
      %p102 = por %p100, %p101
      %p103 = scmp.ne.s32.totalorder %s95, %s97
      %p104 = scmp.eq.s32.totalorder %s24, 1
      %p105 = por %p103, %p104
      %p106 = scmp.ne.s32.totalorder %s97, %s98
      %p107 = scmp.eq.s32.totalorder %s24, 0
      %p108 = por %p106, %p107
      %p109 = scmp.ne.s32.totalorder %s97, %s98
      %p110 = scmp.eq.s32.totalorder %s25, 1
      %p111 = por %p109, %p110
      %p113 = scmp.ne.s32.totalorder %s98, %s112
      %p114 = scmp.eq.s32.totalorder %s25, 0
      %p115 = por %p113, %p114
      %s117 = sadd.s32 %s116, 1
      %p120 = scmp.eq.s32.totalorder %s19, 1
      %p121 = scmp.ne.s32.totalorder %s116, %s118
      %p122 = scmp.eq.s32.totalorder %s19, 0
      %p123 = por %p121, %p122
      %p124 = scmp.ne.s32.totalorder %s116, %s118
      %p125 = scmp.eq.s32.totalorder %s24, 1
      %p126 = por %p124, %p125
      %p127 = scmp.ne.s32.totalorder %s118, %s119
      %p128 = scmp.eq.s32.totalorder %s24, 0
      %p129 = por %p127, %p128
      %p130 = scmp.ne.s32.totalorder %s118, %s119
      %p131 = scmp.eq.s32.totalorder %s25, 1
      %p132 = por %p130, %p131
      %p134 = scmp.ne.s32.totalorder %s119, %s133
      %p135 = scmp.eq.s32.totalorder %s25, 0
      %p136 = por %p134, %p135
      %s138 = sadd.s32 %s137, 1
      %p141 = scmp.eq.s32.totalorder %s19, 1
      %p142 = scmp.ne.s32.totalorder %s137, %s139
      %p143 = scmp.eq.s32.totalorder %s19, 0
      %p144 = por %p142, %p143
      %p145 = scmp.ne.s32.totalorder %s137, %s139
      %p146 = scmp.eq.s32.totalorder %s24, 1
      %p147 = por %p145, %p146
      %p148 = scmp.ne.s32.totalorder %s139, %s140
      %p149 = scmp.eq.s32.totalorder %s24, 0
      %p150 = por %p148, %p149
      %p151 = scmp.ne.s32.totalorder %s139, %s140
      %p152 = scmp.eq.s32.totalorder %s25, 1
      %p153 = por %p151, %p152
      %p155 = scmp.ne.s32.totalorder %s140, %s154
      %p156 = scmp.eq.s32.totalorder %s25, 0
      %p157 = por %p155, %p156
      %s159 = sadd.s32 %s158, 1
      %p162 = scmp.eq.s32.totalorder %s19, 1
      %p163 = scmp.ne.s32.totalorder %s158, %s160
      %p164 = scmp.eq.s32.totalorder %s19, 0
      %p165 = por %p163, %p164
      %p166 = scmp.ne.s32.totalorder %s158, %s160
      %p167 = scmp.eq.s32.totalorder %s24, 1
      %p168 = por %p166, %p167
      %p169 = scmp.ne.s32.totalorder %s160, %s161
      %p170 = scmp.eq.s32.totalorder %s24, 0
      %p171 = por %p169, %p170
      %p172 = scmp.ne.s32.totalorder %s160, %s161
      %p173 = scmp.eq.s32.totalorder %s25, 1
      %p174 = por %p172, %p173
      %p176 = scmp.ne.s32.totalorder %s161, %s175
      %p177 = scmp.eq.s32.totalorder %s25, 0
      %p178 = por %p176, %p177
      %s179 = ssub.s32 %s19, %s26
      %p180 = scmp.eq.s32.totalorder %s179, 0
      %s182 = sadd.s32 %s181, 1
      %s183 = scalar_select %p180, %s181, %s182
      %p186 = pneg %p180
      %p187 = scmp.eq.s32.totalorder %s19, 1
      %p188 = por %p186, %p187
      %p189 = scmp.ne.s32.totalorder %s181, %s184
      %p190 = scmp.eq.s32.totalorder %s19, 0
      %p191 = por %p189, %p190
      %p192 = scmp.ne.s32.totalorder %s181, %s184
      %p193 = scmp.eq.s32.totalorder %s24, 1
      %p194 = por %p192, %p193
      %p195 = scmp.ne.s32.totalorder %s184, %s185
      %p196 = scmp.eq.s32.totalorder %s24, 0
      %p197 = por %p195, %p196
      %p198 = scmp.ne.s32.totalorder %s184, %s185
      %p199 = scmp.eq.s32.totalorder %s25, 1
      %p200 = por %p198, %p199
      %p202 = scmp.ne.s32.totalorder %s185, %s201
      %p203 = scmp.eq.s32.totalorder %s25, 0
      %p204 = por %p202, %p203
      %s205 = ssub.s32 %s19, %s26
      %p206 = scmp.eq.s32.totalorder %s205, 0
      %s208 = sadd.s32 %s207, 1
      %s209 = scalar_select %p206, %s207, %s208
      %p212 = pneg %p206
      %p213 = scmp.eq.s32.totalorder %s19, 1
      %p214 = por %p212, %p213
      %p215 = scmp.ne.s32.totalorder %s207, %s210
      %p216 = scmp.eq.s32.totalorder %s19, 0
      %p217 = por %p215, %p216
      %p218 = scmp.ne.s32.totalorder %s207, %s210
      %p219 = scmp.eq.s32.totalorder %s24, 1
      %p220 = por %p218, %p219
      %p221 = scmp.ne.s32.totalorder %s210, %s211
      %p222 = scmp.eq.s32.totalorder %s24, 0
      %p223 = por %p221, %p222
      %p224 = scmp.ne.s32.totalorder %s210, %s211
      %p225 = scmp.eq.s32.totalorder %s25, 1
      %p226 = por %p224, %p225
      %p228 = scmp.ne.s32.totalorder %s211, %s227
      %p229 = scmp.eq.s32.totalorder %s25, 0
      %p230 = por %p228, %p229
      %p231 = scmp.le.s32.totalorder 1, %s19
      %p232 = scmp.lt.s32.totalorder %s19, 3
      %p233 = pnand %p231, %p232
      %p234 = pneg %p233
      // Predicated region
      $region9: #{tpu_custom_call.1} parent=5 // pred_check
        _
      $region10: #{tpu_custom_call.1} parent=5 // pred_check_branch
        %236 = sbr.rel (%p233) target = $region12
      $region11: #{tpu_custom_call.1} parent=5 // pred_region
        %s237 = ssub.s32 %s19, 1
        // Predicated region
        $region13: #{tpu_custom_call.1} parent=11 // pred_check
          %p238 = pneg %p66
        $region14: #{tpu_custom_call.1} parent=11 // pred_check_branch
          %240 = sbr.rel (%p238) target = $region16
        $region15: #{tpu_custom_call.1} parent=11 // pred_region
          _
        $region16: #{tpu_custom_call.1} parent=11 // pred_fallthru
          _
        // Predicated region
        $region17: #{tpu_custom_call.1} parent=11 // pred_check
          %p241 = pneg %p87
        $region18: #{tpu_custom_call.1} parent=11 // pred_check_branch
          %243 = sbr.rel (%p241) target = $region20
        $region19: #{tpu_custom_call.1} parent=11 // pred_region
          _
        $region20: #{tpu_custom_call.1} parent=11 // pred_fallthru
          _
        // Predicated region
        $region21: #{tpu_custom_call.1} parent=11 // pred_check
          %p244 = pneg %p108
        $region22: #{tpu_custom_call.1} parent=11 // pred_check_branch
          %246 = sbr.rel (%p244) target = $region24
        $region23: #{tpu_custom_call.1} parent=11 // pred_region
          _
        $region24: #{tpu_custom_call.1} parent=11 // pred_fallthru
          _
        // Predicated region
        $region25: #{tpu_custom_call.1} parent=11 // pred_check
          %p247 = pneg %p129
        $region26: #{tpu_custom_call.1} parent=11 // pred_check_branch
          %249 = sbr.rel (%p247) target = $region28
        $region27: #{tpu_custom_call.1} parent=11 // pred_region
          _
        $region28: #{tpu_custom_call.1} parent=11 // pred_fallthru
          _
        // Predicated region
        $region29: #{tpu_custom_call.1} parent=11 // pred_check
          %p250 = pneg %p150
        $region30: #{tpu_custom_call.1} parent=11 // pred_check_branch
          %252 = sbr.rel (%p250) target = $region32
        $region31: #{tpu_custom_call.1} parent=11 // pred_region
          _
        $region32: #{tpu_custom_call.1} parent=11 // pred_fallthru
          _
        // Predicated region
        $region33: #{tpu_custom_call.1} parent=11 // pred_check
          %p253 = pneg %p171
        $region34: #{tpu_custom_call.1} parent=11 // pred_check_branch
          %255 = sbr.rel (%p253) target = $region36
        $region35: #{tpu_custom_call.1} parent=11 // pred_region
          %257 = vsyncadd [#allocation3], 0
          %s258 = sshll.u32 %s6, 4
          %s259 = int_to_ptr.hbm [resolvable:$true] %s258
          %s260 = sshll.u32 [#allocation2], 4
          %s261 = int_to_ptr.vmem [resolvable:$true] %s260
          %266 = dma.hbm_to_vmem [thread:$0]  %s259, 4096, %s261, [#allocation3], 128, 128, 8
        $region36: #{tpu_custom_call.1} parent=11 // pred_fallthru
          _
      $region12: #{tpu_custom_call.1} parent=5 // pred_fallthru
        _
      %p267 = scmp.lt.s32.totalorder %s19, 2
      // Predicated region
      $region37: #{tpu_custom_call.1} parent=5 // pred_check
        %p268 = pneg %p267
      $region38: #{tpu_custom_call.1} parent=5 // pred_check_branch
        %270 = sbr.rel (%p268) target = $region40
      $region39: #{tpu_custom_call.1} parent=5 // pred_region
        // Predicated region
        $region41: #{tpu_custom_call.1} parent=39 // pred_check
          %p271 = pneg %p39
        $region42: #{tpu_custom_call.1} parent=39 // pred_check_branch
          %273 = sbr.rel (%p271) target = $region44
        $region43: #{tpu_custom_call.1} parent=39 // pred_region
          %p274 = scmp.lt.s32.totalorder %s19, 1
          %s275 = scalar_select %p274, %s19, 1
          %s276 = smul.addr %s275, 8
          %s277 = smul.addr %s276, 8
          %s278 = scalar_lea.vmem %s0, %s277
        $region44: #{tpu_custom_call.1} parent=39 // pred_fallthru
          _
      $region40: #{tpu_custom_call.1} parent=5 // pred_fallthru
        _
      %p279 = scmp.le.s32.totalorder 1, %s19
      %p280 = scmp.lt.s32.totalorder %s19, 3
      %p281 = pnand %p279, %p280
      %p282 = pneg %p281
      // Predicated region
      $region45: #{tpu_custom_call.1} parent=5 // pred_check
        _
      $region46: #{tpu_custom_call.1} parent=5 // pred_check_branch
        %284 = sbr.rel (%p281) target = $region48
      $region47: #{tpu_custom_call.1} parent=5 // pred_region
        %s285 = ssub.s32 %s19, 1
        // Predicated region
        $region49: #{tpu_custom_call.1} parent=47 // pred_check
          %p286 = pneg %p171
        $region50: #{tpu_custom_call.1} parent=47 // pred_check_branch
          %288 = sbr.rel (%p286) target = $region52
        $region51: #{tpu_custom_call.1} parent=47 // pred_region
          %290 = dma.done [#allocation3], 4096
        $region52: #{tpu_custom_call.1} parent=47 // pred_fallthru
          _
        %p291 = scmp.lt.s32.totalorder %s24, 1
        %s292 = scalar_select %p291, %s24, 1
        %s293 = smul.addr %s292, 8
        %s294 = smul.addr %s293, 8
        %s295 = scalar_lea.vmem %s0, %s294
        %p296 = pneg %p45
        %p297 = pneg %p42
        %p298 = pneg %p66
        %p299 = pneg %p63
        %p300 = pneg %p87
        %p301 = pneg %p84
        %p302 = pneg %p108
        %p303 = pneg %p105
        %p304 = pneg %p129
        %p305 = pneg %p126
        %p306 = pneg %p150
        %p307 = pneg %p147
        %p308 = pneg %p171
        %p309 = pneg %p168
        %p310 = pneg %p197
        %p311 = pneg %p194
        %p312 = scmp.lt.s32.totalorder %s24, 1
        %s313 = scalar_select %p312, %s24, 1
        %s314 = smul.addr %s313, 8
        %s315 = smul.addr %s314, 8
        %s316 = scalar_lea.vmem %s7, %s315
        %p317 = pneg %p223
        %p318 = pneg %p220
        %s319 = sand.u32 %s210, 1
        %s320 = scalar_lea.sflag [#allocation4], %s319
        %s321 = sand.u32 %s210, 1
        %s322 = smul.addr %s321, 128
        %s323 = scalar_lea.vmem [#allocation5], %s322
        %p324 = scmp.lt.s32.totalorder %s24, 1
        %s325 = scalar_select %p324, %s24, 1
        %s326 = smul.addr %s325, 8
        %s327 = smul.addr %s326, 8
        %s328 = scalar_lea.vmem %s0, %s327
        %p329 = scmp.lt.s32.totalorder %s24, 1
        %s330 = scalar_select %p329, %s24, 1
        %s331 = smul.addr %s330, 8
        %s332 = smul.addr %s331, 8
        %s333 = scalar_lea.vmem %s7, %s332
        %v334 = vld [vmem:[%s328] sm:$0xff]
        %v335 = vld [vmem:[%s328 + $0x8] sm:$0xff]
        %v336 = vld [vmem:[%s328 + $0x10] sm:$0xff]
        %v337 = vld [vmem:[%s328 + $0x18] sm:$0xff]
        %v338 = vld [vmem:[%s328 + $0x20] sm:$0xff]
        %v339 = vld [vmem:[%s328 + $0x28] sm:$0xff]
        %v340 = vld [vmem:[%s328 + $0x30] sm:$0xff]
        %v341 = vld [vmem:[%s328 + $0x38] sm:$0xff]
        %v342 = vld [vmem:[%s1] sm:$0xff]
        %v343 = vld [vmem:[%s1 + $0x8] sm:$0xff]
        %v344 = vld [vmem:[%s1 + $0x10] sm:$0xff]
        %v345 = vld [vmem:[%s1 + $0x18] sm:$0xff]
        %v346 = vld [vmem:[%s2] sm:$0x1]
        %v348 = vperm.slane %v346, 0
        %vm350 = vcmask 261120
        %v352 = vsel %vm350, %v334, 0
        %v355 = vsel %vm350, %v335, 0
        %v358 = vsel %vm350, %v336, 0
        %v361 = vsel %vm350, %v337, 0
        %v364 = vsel %vm350, %v338, 0
        %v367 = vsel %vm350, %v339, 0
        %v370 = vsel %vm350, %v340, 0
        %v373 = vsel %vm350, %v341, 0
        %375 = vmatpush.msra.mxu0 0.0
        %376 = vmatpush.msra.mxu0 0.0
        %377 = vmatpush.msra.mxu0 0.0
        %378 = vmatpush.msra.mxu0 0.0
        %379 = vmatpush.msra.mxu0 0.0
        %380 = vmatpush.msra.mxu0 0.0
        %381 = vmatpush.msra.mxu0 0.0
        %382 = vmatpush.msra.mxu0 0.0
        %383 = vmatpush.msra.mxu0 0.0
        %384 = vmatpush.msra.mxu0 0.0
        %385 = vmatpush.msra.mxu0 0.0
        %386 = vmatpush.msra.mxu0 0.0
        %387 = vmatpush.msra.mxu0 %v345
        %388 = vmatpush.msra.mxu0 %v344
        %389 = vmatpush.msra.mxu0 %v343
        %390 = vmatpush.msra.mxu0 %v342
        %391 = vmatmul.f32.gmra.mxu0 %v352
        %v392 = vpop.f32.mrf.mxu0
        %v393 = vadd.f32 %v348, %v392
        %394 = vmatmul.f32.gmra.mxu0 %v355
        %v395 = vpop.f32.mrf.mxu0
        %v396 = vadd.f32 %v348, %v395
        %397 = vmatmul.f32.gmra.mxu0 %v358
        %v398 = vpop.f32.mrf.mxu0
        %v399 = vadd.f32 %v348, %v398
        %400 = vmatmul.f32.gmra.mxu0 %v361
        %v401 = vpop.f32.mrf.mxu0
        %v402 = vadd.f32 %v348, %v401
        %403 = vmatmul.f32.gmra.mxu0 %v364
        %v404 = vpop.f32.mrf.mxu0
        %v405 = vadd.f32 %v348, %v404
        %406 = vmatmul.f32.gmra.mxu0 %v367
        %v407 = vpop.f32.mrf.mxu0
        %v408 = vadd.f32 %v348, %v407
        %409 = vmatmul.f32.gmra.mxu0 %v370
        %v410 = vpop.f32.mrf.mxu0
        %v411 = vadd.f32 %v348, %v410
        %412 = vmatmul.f32.gmra.mxu0 %v373
        %v413 = vpop.f32.mrf.mxu0
        %v414 = vadd.f32 %v348, %v413
        %415 = vdwg.mxu0
        %v416 = vmul.f32 %v393, %v393
        %v417 = vmul.f32 %v396, %v396
        %v418 = vmul.f32 %v399, %v399
        %v419 = vmul.f32 %v402, %v402
        %v420 = vmul.f32 %v405, %v405
        %v421 = vmul.f32 %v408, %v408
        %v422 = vmul.f32 %v411, %v411
        %v423 = vmul.f32 %v414, %v414
        %v424 = vld [vmem:[%s5] sm:$0xf]
        %v426 = vsel %vm350, %v416, 0
        %v429 = vsel %vm350, %v417, 0
        %v432 = vsel %vm350, %v418, 0
        %v435 = vsel %vm350, %v419, 0
        %v438 = vsel %vm350, %v420, 0
        %v441 = vsel %vm350, %v421, 0
        %v444 = vsel %vm350, %v422, 0
        %v447 = vsel %vm350, %v423, 0
        %v450 = vsel %vm350, %v424, 0
        %452 = vmatpush.xpose.msra.mxu0 0.0
        %453 = vmatpush.xpose.msra.mxu0 0.0
        %454 = vmatpush.xpose.msra.mxu0 0.0
        %455 = vmatpush.xpose.msra.mxu0 0.0
        %456 = vmatpush.xpose.msra.mxu0 0.0
        %457 = vmatpush.xpose.msra.mxu0 0.0
        %458 = vmatpush.xpose.msra.mxu0 0.0
        %459 = vmatpush.xpose.msra.mxu0 0.0
        %460 = vmatpush.xpose.msra.mxu0 0.0
        %461 = vmatpush.xpose.msra.mxu0 0.0
        %462 = vmatpush.xpose.msra.mxu0 0.0
        %463 = vmatpush.xpose.msra.mxu0 0.0
        %464 = vmatpush.xpose.msra.mxu0 0.0
        %465 = vmatpush.xpose.msra.mxu0 0.0
        %466 = vmatpush.xpose.msra.mxu0 0.0
        %467 = vmatpush.xpose.msra.mxu0 %v450
        %468 = vmatmul.f32.gmra.mxu0 %v426
        %v469 = vpop.f32.mrf.mxu0
        %v470 = vadd.f32 0.0001, %v469
        %471 = vmatmul.f32.gmra.mxu0 %v429
        %v472 = vpop.f32.mrf.mxu0
        %v473 = vadd.f32 0.0001, %v472
        %474 = vmatmul.f32.gmra.mxu0 %v432
        %v475 = vpop.f32.mrf.mxu0
        %v476 = vadd.f32 0.0001, %v475
        %477 = vmatmul.f32.gmra.mxu0 %v435
        %v478 = vpop.f32.mrf.mxu0
        %v479 = vadd.f32 0.0001, %v478
        %480 = vmatmul.f32.gmra.mxu0 %v438
        %v481 = vpop.f32.mrf.mxu0
        %v482 = vadd.f32 0.0001, %v481
        %483 = vmatmul.f32.gmra.mxu0 %v441
        %v484 = vpop.f32.mrf.mxu0
        %v485 = vadd.f32 0.0001, %v484
        %486 = vmatmul.f32.gmra.mxu0 %v444
        %v487 = vpop.f32.mrf.mxu0
        %v488 = vadd.f32 0.0001, %v487
        %489 = vmatmul.f32.gmra.mxu0 %v447
        %v490 = vpop.f32.mrf.mxu0
        %v491 = vadd.f32 0.0001, %v490
        %492 = vdwg.mxu0
        %v493 = vrsqrt.pop %v470
        %v494 = vmul.f32 %v493, %v470
        %v495 = vmul.f32 %v494, %v493
        %v496 = vmul.f32 0.5, %v495
        %v497 = vsub.f32 1.5, %v496
        %v498 = vmul.f32 %v493, %v497
        %v499 = vmul.f32 %v470, %v498
        %vm500 = vcmp.eq.f32.partialorder %v470, inf
        %v501 = vsel %vm500, %v470, %v499
        %vm502 = vcmp.eq.f32.partialorder %v470, 0.0
        %v503 = vand.u32 %v470, 2147483648
        %v504 = vsel %vm502, %v503, %v501
        %v505 = vrsqrt.pop %v473
        %v506 = vmul.f32 %v505, %v473
        %v507 = vmul.f32 %v506, %v505
        %v508 = vmul.f32 0.5, %v507
        %v509 = vsub.f32 1.5, %v508
        %v510 = vmul.f32 %v505, %v509
        %v511 = vmul.f32 %v473, %v510
        %vm512 = vcmp.eq.f32.partialorder %v473, inf
        %v513 = vsel %vm512, %v473, %v511
        %vm514 = vcmp.eq.f32.partialorder %v473, 0.0
        %v515 = vand.u32 %v473, 2147483648
        %v516 = vsel %vm514, %v515, %v513
        %v517 = vrsqrt.pop %v476
        %v518 = vmul.f32 %v517, %v476
        %v519 = vmul.f32 %v518, %v517
        %v520 = vmul.f32 0.5, %v519
        %v521 = vsub.f32 1.5, %v520
        %v522 = vmul.f32 %v517, %v521
        %v523 = vmul.f32 %v476, %v522
        %vm524 = vcmp.eq.f32.partialorder %v476, inf
        %v525 = vsel %vm524, %v476, %v523
        %vm526 = vcmp.eq.f32.partialorder %v476, 0.0
        %v527 = vand.u32 %v476, 2147483648
        %v528 = vsel %vm526, %v527, %v525
        %v529 = vrsqrt.pop %v479
        %v530 = vmul.f32 %v529, %v479
        %v531 = vmul.f32 %v530, %v529
        %v532 = vmul.f32 0.5, %v531
        %v533 = vsub.f32 1.5, %v532
        %v534 = vmul.f32 %v529, %v533
        %v535 = vmul.f32 %v479, %v534
        %vm536 = vcmp.eq.f32.partialorder %v479, inf
        %v537 = vsel %vm536, %v479, %v535
        %vm538 = vcmp.eq.f32.partialorder %v479, 0.0
        %v539 = vand.u32 %v479, 2147483648
        %v540 = vsel %vm538, %v539, %v537
        %v541 = vrsqrt.pop %v482
        %v542 = vmul.f32 %v541, %v482
        %v543 = vmul.f32 %v542, %v541
        %v544 = vmul.f32 0.5, %v543
        %v545 = vsub.f32 1.5, %v544
        %v546 = vmul.f32 %v541, %v545
        %v547 = vmul.f32 %v482, %v546
        %vm548 = vcmp.eq.f32.partialorder %v482, inf
        %v549 = vsel %vm548, %v482, %v547
        %vm550 = vcmp.eq.f32.partialorder %v482, 0.0
        %v551 = vand.u32 %v482, 2147483648
        %v552 = vsel %vm550, %v551, %v549
        %v553 = vrsqrt.pop %v485
        %v554 = vmul.f32 %v553, %v485
        %v555 = vmul.f32 %v554, %v553
        %v556 = vmul.f32 0.5, %v555
        %v557 = vsub.f32 1.5, %v556
        %v558 = vmul.f32 %v553, %v557
        %v559 = vmul.f32 %v485, %v558
        %vm560 = vcmp.eq.f32.partialorder %v485, inf
        %v561 = vsel %vm560, %v485, %v559
        %vm562 = vcmp.eq.f32.partialorder %v485, 0.0
        %v563 = vand.u32 %v485, 2147483648
        %v564 = vsel %vm562, %v563, %v561
        %v565 = vrsqrt.pop %v488
        %v566 = vmul.f32 %v565, %v488
        %v567 = vmul.f32 %v566, %v565
        %v568 = vmul.f32 0.5, %v567
        %v569 = vsub.f32 1.5, %v568
        %v570 = vmul.f32 %v565, %v569
        %v571 = vmul.f32 %v488, %v570
        %vm572 = vcmp.eq.f32.partialorder %v488, inf
        %v573 = vsel %vm572, %v488, %v571
        %vm574 = vcmp.eq.f32.partialorder %v488, 0.0
        %v575 = vand.u32 %v488, 2147483648
        %v576 = vsel %vm574, %v575, %v573
        %v577 = vrsqrt.pop %v491
        %v578 = vmul.f32 %v577, %v491
        %v579 = vmul.f32 %v578, %v577
        %v580 = vmul.f32 0.5, %v579
        %v581 = vsub.f32 1.5, %v580
        %v582 = vmul.f32 %v577, %v581
        %v583 = vmul.f32 %v491, %v582
        %vm584 = vcmp.eq.f32.partialorder %v491, inf
        %v585 = vsel %vm584, %v491, %v583
        %vm586 = vcmp.eq.f32.partialorder %v491, 0.0
        %v587 = vand.u32 %v491, 2147483648
        %v588 = vsel %vm586, %v587, %v585
        %589 = vrot.lane.b32.xlu0 %v416, 96
        %v590 = vpop.permute.xlu0 %589
        %591 = vrot.lane.b32.xlu0 %v417, 96
        %v592 = vpop.permute.xlu0 %591
        %593 = vrot.lane.b32.xlu0 %v418, 96
        %v594 = vpop.permute.xlu0 %593
        %595 = vrot.lane.b32.xlu0 %v419, 96
        %v596 = vpop.permute.xlu0 %595
        %597 = vrot.lane.b32.xlu0 %v420, 96
        %v598 = vpop.permute.xlu0 %597
        %599 = vrot.lane.b32.xlu0 %v421, 96
        %v600 = vpop.permute.xlu0 %599
        %601 = vrot.lane.b32.xlu0 %v422, 96
        %v602 = vpop.permute.xlu0 %601
        %603 = vrot.lane.b32.xlu0 %v423, 96
        %v604 = vpop.permute.xlu0 %603
        %v605 = vsel %vm350, %v590, 0
        %v607 = vsel %vm350, %v592, 0
        %v609 = vsel %vm350, %v594, 0
        %v611 = vsel %vm350, %v596, 0
        %v613 = vsel %vm350, %v598, 0
        %v615 = vsel %vm350, %v600, 0
        %v617 = vsel %vm350, %v602, 0
        %v619 = vsel %vm350, %v604, 0
        %621 = vmatpush.xpose.msra.mxu0 0.0
        %622 = vmatpush.xpose.msra.mxu0 0.0
        %623 = vmatpush.xpose.msra.mxu0 0.0
        %624 = vmatpush.xpose.msra.mxu0 0.0
        %625 = vmatpush.xpose.msra.mxu0 0.0
        %626 = vmatpush.xpose.msra.mxu0 0.0
        %627 = vmatpush.xpose.msra.mxu0 0.0
        %628 = vmatpush.xpose.msra.mxu0 0.0
        %629 = vmatpush.xpose.msra.mxu0 %v619
        %630 = vmatpush.xpose.msra.mxu0 %v617
        %631 = vmatpush.xpose.msra.mxu0 %v615
        %632 = vmatpush.xpose.msra.mxu0 %v613
        %633 = vmatpush.xpose.msra.mxu0 %v611
        %634 = vmatpush.xpose.msra.mxu0 %v609
        %635 = vmatpush.xpose.msra.mxu0 %v607
        %636 = vmatpush.xpose.msra.mxu0 %v605
        %637 = vmatmul.f32.gmra.mxu0 %v450
        %v638 = vpop.f32.mrf.mxu0
        %v639 = vadd.f32 0.0001, %v638
        %640 = vdwg.mxu0
        %v641 = vrsqrt.pop %v639
        %v642 = vmul.f32 %v641, %v639
        %v643 = vmul.f32 %v642, %v641
        %v644 = vmul.f32 0.5, %v643
        %v645 = vsub.f32 1.5, %v644
        %v646 = vmul.f32 %v641, %v645
        %v647 = vmul.f32 %v639, %v646
        %vm648 = vcmp.eq.f32.partialorder %v639, inf
        %v649 = vsel %vm648, %v639, %v647
        %vm650 = vcmp.eq.f32.partialorder %v639, 0.0
        %v651 = vand.u32 %v639, 2147483648
        %v652 = vsel %vm650, %v651, %v649
        %661 = vrot.lane.b32.xlu0 %v393, 96
        %v662 = vpop.permute.xlu0 %661
        %663 = vrot.lane.b32.xlu0 %v396, 96
        %v664 = vpop.permute.xlu0 %663
        %665 = vrot.lane.b32.xlu0 %v399, 96
        %v666 = vpop.permute.xlu0 %665
        %667 = vrot.lane.b32.xlu0 %v402, 96
        %v668 = vpop.permute.xlu0 %667
        %669 = vrot.lane.b32.xlu0 %v405, 96
        %v670 = vpop.permute.xlu0 %669
        %671 = vrot.lane.b32.xlu0 %v408, 96
        %v672 = vpop.permute.xlu0 %671
        %673 = vrot.lane.b32.xlu0 %v411, 96
        %v674 = vpop.permute.xlu0 %673
        %675 = vrot.lane.b32.xlu0 %v414, 96
        %v676 = vpop.permute.xlu0 %675
        %vm677 = vcmask 64512
        %v678 = vsel %vm677, %v393, 0
        %v680 = vsel %vm677, %v396, 0
        %v682 = vsel %vm677, %v399, 0
        %v684 = vsel %vm677, %v402, 0
        %v686 = vsel %vm677, %v405, 0
        %v688 = vsel %vm677, %v408, 0
        %v690 = vsel %vm677, %v411, 0
        %v692 = vsel %vm677, %v414, 0
        %v694 = vsel %vm677, %v662, 0
        %v696 = vsel %vm677, %v664, 0
        %v698 = vsel %vm677, %v666, 0
        %v700 = vsel %vm677, %v668, 0
        %v702 = vsel %vm677, %v670, 0
        %v704 = vsel %vm677, %v672, 0
        %v706 = vsel %vm677, %v674, 0
        %v708 = vsel %vm677, %v676, 0
        %710 = vmatpush.xpose.msra.mxu0 0.0
        %711 = vmatpush.xpose.msra.mxu0 0.0
        %712 = vmatpush.xpose.msra.mxu0 0.0
        %713 = vmatpush.xpose.msra.mxu0 0.0
        %714 = vmatpush.xpose.msra.mxu0 0.0
        %715 = vmatpush.xpose.msra.mxu0 0.0
        %716 = vmatpush.xpose.msra.mxu0 0.0
        %717 = vmatpush.xpose.msra.mxu0 0.0
        %718 = vmatpush.xpose.msra.mxu0 %v708
        %719 = vmatpush.xpose.msra.mxu0 %v706
        %720 = vmatpush.xpose.msra.mxu0 %v704
        %721 = vmatpush.xpose.msra.mxu0 %v702
        %722 = vmatpush.xpose.msra.mxu0 %v700
        %723 = vmatpush.xpose.msra.mxu0 %v698
        %724 = vmatpush.xpose.msra.mxu0 %v696
        %725 = vmatpush.xpose.msra.mxu0 %v694
        %726 = vmatmul.f32.gmra.mxu0 %v678
        %v727 = vpop.f32.mrf.mxu0
        %v728 = vadd.f32 0.0, %v727
        %729 = vmatmul.f32.gmra.mxu0 %v680
        %v730 = vpop.f32.mrf.mxu0
        %v731 = vadd.f32 0.0, %v730
        %732 = vmatmul.f32.gmra.mxu0 %v682
        %v733 = vpop.f32.mrf.mxu0
        %v734 = vadd.f32 0.0, %v733
        %735 = vmatmul.f32.gmra.mxu0 %v684
        %v736 = vpop.f32.mrf.mxu0
        %v737 = vadd.f32 0.0, %v736
        %738 = vmatmul.f32.gmra.mxu0 %v686
        %v739 = vpop.f32.mrf.mxu0
        %v740 = vadd.f32 0.0, %v739
        %741 = vmatmul.f32.gmra.mxu0 %v688
        %v742 = vpop.f32.mrf.mxu0
        %v743 = vadd.f32 0.0, %v742
        %744 = vmatmul.f32.gmra.mxu0 %v690
        %v745 = vpop.f32.mrf.mxu0
        %v746 = vadd.f32 0.0, %v745
        %747 = vmatmul.f32.gmra.mxu0 %v692
        %v748 = vpop.f32.mrf.mxu0
        %v749 = vadd.f32 0.0, %v748
        %750 = vdwg.mxu0
        %752 = vset.pattern.permute.xlu0 0
        %753 = vperm.xlu0 %752, %v504
        %v754 = vpop.permute.xlu0 %753
        %757 = vset.pattern.permute.xlu0 0
        %758 = vperm.xlu0 %757, %v516
        %v759 = vpop.permute.xlu0 %758
        %762 = vset.pattern.permute.xlu0 0
        %763 = vperm.xlu0 %762, %v528
        %v764 = vpop.permute.xlu0 %763
        %767 = vset.pattern.permute.xlu0 0
        %768 = vperm.xlu0 %767, %v540
        %v769 = vpop.permute.xlu0 %768
        %772 = vset.pattern.permute.xlu0 0
        %773 = vperm.xlu0 %772, %v552
        %v774 = vpop.permute.xlu0 %773
        %777 = vset.pattern.permute.xlu0 0
        %778 = vperm.xlu0 %777, %v564
        %v779 = vpop.permute.xlu0 %778
        %782 = vset.pattern.permute.xlu0 0
        %783 = vperm.xlu0 %782, %v576
        %v784 = vpop.permute.xlu0 %783
        %787 = vset.pattern.permute.xlu0 0
        %788 = vperm.xlu0 %787, %v588
        %v789 = vpop.permute.xlu0 %788
        %v791 = vperm.slane %v652, 0
        %v792 = vmul.f32 %v754, %v791
        %v793 = vmul.f32 %v759, %v791
        %v794 = vmul.f32 %v764, %v791
        %v795 = vmul.f32 %v769, %v791
        %v796 = vmul.f32 %v774, %v791
        %v797 = vmul.f32 %v779, %v791
        %v798 = vmul.f32 %v784, %v791
        %v799 = vmul.f32 %v789, %v791
        %v800 = vadd.f32 %v792, 0.0001
        %v801 = vadd.f32 %v793, 0.0001
        %v802 = vadd.f32 %v794, 0.0001
        %v803 = vadd.f32 %v795, 0.0001
        %v804 = vadd.f32 %v796, 0.0001
        %v805 = vadd.f32 %v797, 0.0001
        %v806 = vadd.f32 %v798, 0.0001
        %v807 = vadd.f32 %v799, 0.0001
        %v808 = vrcp.pop %v800
        %v809 = vmul.f32 %v800, %v808
        %v810 = vsub.f32 1.0, %v809
        %v811 = vmul.f32 %v808, %v810
        %v812 = vadd.f32 %v808, %v811
        %vm813 = vweird.f32 %v800
        %vm814 = vweird.f32 %v808
        %vm815 = vmor %vm813, %vm814
        %v816 = vsel %vm815, %v808, %v812
        %v817 = vand.u32 2147483647, %v800
        %vm818 = vcmp.eq.f32.partialorder %v817, 8.507059e+37
        %v819 = vand.u32 %v800, 2147483648
        %v820 = vor.u32 1.1754944e-38, %v819
        %v821 = vsel %vm818, %v820, %v816
        %v822 = vmul.f32 %v728, %v821
        %v823 = vrcp.pop %v801
        %v824 = vmul.f32 %v801, %v823
        %v825 = vsub.f32 1.0, %v824
        %v826 = vmul.f32 %v823, %v825
        %v827 = vadd.f32 %v823, %v826
        %vm828 = vweird.f32 %v801
        %vm829 = vweird.f32 %v823
        %vm830 = vmor %vm828, %vm829
        %v831 = vsel %vm830, %v823, %v827
        %v832 = vand.u32 2147483647, %v801
        %vm833 = vcmp.eq.f32.partialorder %v832, 8.507059e+37
        %v834 = vand.u32 %v801, 2147483648
        %v835 = vor.u32 1.1754944e-38, %v834
        %v836 = vsel %vm833, %v835, %v831
        %v837 = vmul.f32 %v731, %v836
        %v838 = vrcp.pop %v802
        %v839 = vmul.f32 %v802, %v838
        %v840 = vsub.f32 1.0, %v839
        %v841 = vmul.f32 %v838, %v840
        %v842 = vadd.f32 %v838, %v841
        %vm843 = vweird.f32 %v802
        %vm844 = vweird.f32 %v838
        %vm845 = vmor %vm843, %vm844
        %v846 = vsel %vm845, %v838, %v842
        %v847 = vand.u32 2147483647, %v802
        %vm848 = vcmp.eq.f32.partialorder %v847, 8.507059e+37
        %v849 = vand.u32 %v802, 2147483648
        %v850 = vor.u32 1.1754944e-38, %v849
        %v851 = vsel %vm848, %v850, %v846
        %v852 = vmul.f32 %v734, %v851
        %v853 = vrcp.pop %v803
        %v854 = vmul.f32 %v803, %v853
        %v855 = vsub.f32 1.0, %v854
        %v856 = vmul.f32 %v853, %v855
        %v857 = vadd.f32 %v853, %v856
        %vm858 = vweird.f32 %v803
        %vm859 = vweird.f32 %v853
        %vm860 = vmor %vm858, %vm859
        %v861 = vsel %vm860, %v853, %v857
        %v862 = vand.u32 2147483647, %v803
        %vm863 = vcmp.eq.f32.partialorder %v862, 8.507059e+37
        %v864 = vand.u32 %v803, 2147483648
        %v865 = vor.u32 1.1754944e-38, %v864
        %v866 = vsel %vm863, %v865, %v861
        %v867 = vmul.f32 %v737, %v866
        %v868 = vrcp.pop %v804
        %v869 = vmul.f32 %v804, %v868
        %v870 = vsub.f32 1.0, %v869
        %v871 = vmul.f32 %v868, %v870
        %v872 = vadd.f32 %v868, %v871
        %vm873 = vweird.f32 %v804
        %vm874 = vweird.f32 %v868
        %vm875 = vmor %vm873, %vm874
        %v876 = vsel %vm875, %v868, %v872
        %v877 = vand.u32 2147483647, %v804
        %vm878 = vcmp.eq.f32.partialorder %v877, 8.507059e+37
        %v879 = vand.u32 %v804, 2147483648
        %v880 = vor.u32 1.1754944e-38, %v879
        %v881 = vsel %vm878, %v880, %v876
        %v882 = vmul.f32 %v740, %v881
        %v883 = vrcp.pop %v805
        %v884 = vmul.f32 %v805, %v883
        %v885 = vsub.f32 1.0, %v884
        %v886 = vmul.f32 %v883, %v885
        %v887 = vadd.f32 %v883, %v886
        %vm888 = vweird.f32 %v805
        %vm889 = vweird.f32 %v883
        %vm890 = vmor %vm888, %vm889
        %v891 = vsel %vm890, %v883, %v887
        %v892 = vand.u32 2147483647, %v805
        %vm893 = vcmp.eq.f32.partialorder %v892, 8.507059e+37
        %v894 = vand.u32 %v805, 2147483648
        %v895 = vor.u32 1.1754944e-38, %v894
        %v896 = vsel %vm893, %v895, %v891
        %v897 = vmul.f32 %v743, %v896
        %v898 = vrcp.pop %v806
        %v899 = vmul.f32 %v806, %v898
        %v900 = vsub.f32 1.0, %v899
        %v901 = vmul.f32 %v898, %v900
        %v902 = vadd.f32 %v898, %v901
        %vm903 = vweird.f32 %v806
        %vm904 = vweird.f32 %v898
        %vm905 = vmor %vm903, %vm904
        %v906 = vsel %vm905, %v898, %v902
        %v907 = vand.u32 2147483647, %v806
        %vm908 = vcmp.eq.f32.partialorder %v907, 8.507059e+37
        %v909 = vand.u32 %v806, 2147483648
        %v910 = vor.u32 1.1754944e-38, %v909
        %v911 = vsel %vm908, %v910, %v906
        %v912 = vmul.f32 %v746, %v911
        %v913 = vrcp.pop %v807
        %v914 = vmul.f32 %v807, %v913
        %v915 = vsub.f32 1.0, %v914
        %v916 = vmul.f32 %v913, %v915
        %v917 = vadd.f32 %v913, %v916
        %vm918 = vweird.f32 %v807
        %vm919 = vweird.f32 %v913
        %vm920 = vmor %vm918, %vm919
        %v921 = vsel %vm920, %v913, %v917
        %v922 = vand.u32 2147483647, %v807
        %vm923 = vcmp.eq.f32.partialorder %v922, 8.507059e+37
        %v924 = vand.u32 %v807, 2147483648
        %v925 = vor.u32 1.1754944e-38, %v924
        %v926 = vsel %vm923, %v925, %v921
        %v927 = vmul.f32 %v749, %v926
        %v928 = vld [vmem:[#allocation2] sm:$0xff]
        %v929 = vld [vmem:[#allocation2 + $0x8] sm:$0xff]
        %v930 = vld [vmem:[#allocation2 + $0x10] sm:$0xff]
        %v931 = vld [vmem:[#allocation2 + $0x18] sm:$0xff]
        %v932 = vld [vmem:[#allocation2 + $0x20] sm:$0xff]
        %v933 = vld [vmem:[#allocation2 + $0x28] sm:$0xff]
        %v934 = vld [vmem:[#allocation2 + $0x30] sm:$0xff]
        %v935 = vld [vmem:[#allocation2 + $0x38] sm:$0xff]
        %v936 = vmul.f32 %v822, %v928
        %v937 = vmul.f32 %v837, %v929
        %v938 = vmul.f32 %v852, %v930
        %v939 = vmul.f32 %v867, %v931
        %v940 = vmul.f32 %v882, %v932
        %v941 = vmul.f32 %v897, %v933
        %v942 = vmul.f32 %v912, %v934
        %v943 = vmul.f32 %v927, %v935
        %944 = vrot.lane.b32.xlu0 %v393, 64
        %v945 = vpop.permute.xlu0 %944
        %946 = vrot.lane.b32.xlu0 %v396, 64
        %v947 = vpop.permute.xlu0 %946
        %948 = vrot.lane.b32.xlu0 %v399, 64
        %v949 = vpop.permute.xlu0 %948
        %950 = vrot.lane.b32.xlu0 %v402, 64
        %v951 = vpop.permute.xlu0 %950
        %952 = vrot.lane.b32.xlu0 %v405, 64
        %v953 = vpop.permute.xlu0 %952
        %954 = vrot.lane.b32.xlu0 %v408, 64
        %v955 = vpop.permute.xlu0 %954
        %956 = vrot.lane.b32.xlu0 %v411, 64
        %v957 = vpop.permute.xlu0 %956
        %958 = vrot.lane.b32.xlu0 %v414, 64
        %v959 = vpop.permute.xlu0 %958
        %vm968 = vcmask 523264
        %v970 = vsel %vm968, %v936, 0
        %v973 = vsel %vm968, %v937, 0
        %v976 = vsel %vm968, %v938, 0
        %v979 = vsel %vm968, %v939, 0
        %v982 = vsel %vm968, %v940, 0
        %v985 = vsel %vm968, %v941, 0
        %v988 = vsel %vm968, %v942, 0
        %v991 = vsel %vm968, %v943, 0
        %993 = vmatpush.msra.mxu0 0.0
        %994 = vmatpush.msra.mxu0 0.0
        %995 = vmatpush.msra.mxu0 0.0
        %996 = vmatpush.msra.mxu0 0.0
        %997 = vmatpush.msra.mxu0 0.0
        %998 = vmatpush.msra.mxu0 0.0
        %999 = vmatpush.msra.mxu0 0.0
        %1000 = vmatpush.msra.mxu0 0.0
        %1001 = vmatpush.msra.mxu0 %v959
        %1002 = vmatpush.msra.mxu0 %v957
        %1003 = vmatpush.msra.mxu0 %v955
        %1004 = vmatpush.msra.mxu0 %v953
        %1005 = vmatpush.msra.mxu0 %v951
        %1006 = vmatpush.msra.mxu0 %v949
        %1007 = vmatpush.msra.mxu0 %v947
        %1008 = vmatpush.msra.mxu0 %v945
        %1009 = vmatmul.f32.gmra.mxu0 %v970
        %v1010 = vpop.f32.mrf.mxu0
        %v1011 = vadd.f32 0.0, %v1010
        %1012 = vmatmul.f32.gmra.mxu0 %v973
        %v1013 = vpop.f32.mrf.mxu0
        %v1014 = vadd.f32 0.0, %v1013
        %1015 = vmatmul.f32.gmra.mxu0 %v976
        %v1016 = vpop.f32.mrf.mxu0
        %v1017 = vadd.f32 0.0, %v1016
        %1018 = vmatmul.f32.gmra.mxu0 %v979
        %v1019 = vpop.f32.mrf.mxu0
        %v1020 = vadd.f32 0.0, %v1019
        %1021 = vmatmul.f32.gmra.mxu0 %v982
        %v1022 = vpop.f32.mrf.mxu0
        %v1023 = vadd.f32 0.0, %v1022
        %1024 = vmatmul.f32.gmra.mxu0 %v985
        %v1025 = vpop.f32.mrf.mxu0
        %v1026 = vadd.f32 0.0, %v1025
        %1027 = vmatmul.f32.gmra.mxu0 %v988
        %v1028 = vpop.f32.mrf.mxu0
        %v1029 = vadd.f32 0.0, %v1028
        %1030 = vmatmul.f32.gmra.mxu0 %v991
        %v1031 = vpop.f32.mrf.mxu0
        %v1032 = vadd.f32 0.0, %v1031
        %1033 = vdwg.mxu0
        %1034 = vrot.lane.b32.xlu0 %v393, 120
        %v1035 = vpop.permute.xlu0 %1034
        %1036 = vrot.lane.b32.xlu0 %v396, 120
        %v1037 = vpop.permute.xlu0 %1036
        %1038 = vrot.lane.b32.xlu0 %v399, 120
        %v1039 = vpop.permute.xlu0 %1038
        %1040 = vrot.lane.b32.xlu0 %v402, 120
        %v1041 = vpop.permute.xlu0 %1040
        %1042 = vrot.lane.b32.xlu0 %v405, 120
        %v1043 = vpop.permute.xlu0 %1042
        %1044 = vrot.lane.b32.xlu0 %v408, 120
        %v1045 = vpop.permute.xlu0 %1044
        %1046 = vrot.lane.b32.xlu0 %v411, 120
        %v1047 = vpop.permute.xlu0 %1046
        %1048 = vrot.lane.b32.xlu0 %v414, 120
        %v1049 = vpop.permute.xlu0 %1048
        %1050 = vrot.lane.b32.xlu0 %v393, 88
        %v1051 = vpop.permute.xlu0 %1050
        %1052 = vrot.lane.b32.xlu0 %v396, 88
        %v1053 = vpop.permute.xlu0 %1052
        %1054 = vrot.lane.b32.xlu0 %v399, 88
        %v1055 = vpop.permute.xlu0 %1054
        %1056 = vrot.lane.b32.xlu0 %v402, 88
        %v1057 = vpop.permute.xlu0 %1056
        %1058 = vrot.lane.b32.xlu0 %v405, 88
        %v1059 = vpop.permute.xlu0 %1058
        %1060 = vrot.lane.b32.xlu0 %v408, 88
        %v1061 = vpop.permute.xlu0 %1060
        %1062 = vrot.lane.b32.xlu0 %v411, 88
        %v1063 = vpop.permute.xlu0 %1062
        %1064 = vrot.lane.b32.xlu0 %v414, 88
        %v1065 = vpop.permute.xlu0 %1064
        %v1066 = vsel %vm677, %v1035, 0
        %v1068 = vsel %vm677, %v1037, 0
        %v1070 = vsel %vm677, %v1039, 0
        %v1072 = vsel %vm677, %v1041, 0
        %v1074 = vsel %vm677, %v1043, 0
        %v1076 = vsel %vm677, %v1045, 0
        %v1078 = vsel %vm677, %v1047, 0
        %v1080 = vsel %vm677, %v1049, 0
        %v1082 = vsel %vm677, %v1051, 0
        %v1084 = vsel %vm677, %v1053, 0
        %v1086 = vsel %vm677, %v1055, 0
        %v1088 = vsel %vm677, %v1057, 0
        %v1090 = vsel %vm677, %v1059, 0
        %v1092 = vsel %vm677, %v1061, 0
        %v1094 = vsel %vm677, %v1063, 0
        %v1096 = vsel %vm677, %v1065, 0
        %1098 = vmatpush.xpose.msra.mxu0 0.0
        %1099 = vmatpush.xpose.msra.mxu0 0.0
        %1100 = vmatpush.xpose.msra.mxu0 0.0
        %1101 = vmatpush.xpose.msra.mxu0 0.0
        %1102 = vmatpush.xpose.msra.mxu0 0.0
        %1103 = vmatpush.xpose.msra.mxu0 0.0
        %1104 = vmatpush.xpose.msra.mxu0 0.0
        %1105 = vmatpush.xpose.msra.mxu0 0.0
        %1106 = vmatpush.xpose.msra.mxu0 %v1096
        %1107 = vmatpush.xpose.msra.mxu0 %v1094
        %1108 = vmatpush.xpose.msra.mxu0 %v1092
        %1109 = vmatpush.xpose.msra.mxu0 %v1090
        %1110 = vmatpush.xpose.msra.mxu0 %v1088
        %1111 = vmatpush.xpose.msra.mxu0 %v1086
        %1112 = vmatpush.xpose.msra.mxu0 %v1084
        %1113 = vmatpush.xpose.msra.mxu0 %v1082
        %1114 = vmatmul.f32.gmra.mxu0 %v1066
        %v1115 = vpop.f32.mrf.mxu0
        %v1116 = vadd.f32 0.0, %v1115
        %1117 = vmatmul.f32.gmra.mxu0 %v1068
        %v1118 = vpop.f32.mrf.mxu0
        %v1119 = vadd.f32 0.0, %v1118
        %1120 = vmatmul.f32.gmra.mxu0 %v1070
        %v1121 = vpop.f32.mrf.mxu0
        %v1122 = vadd.f32 0.0, %v1121
        %1123 = vmatmul.f32.gmra.mxu0 %v1072
        %v1124 = vpop.f32.mrf.mxu0
        %v1125 = vadd.f32 0.0, %v1124
        %1126 = vmatmul.f32.gmra.mxu0 %v1074
        %v1127 = vpop.f32.mrf.mxu0
        %v1128 = vadd.f32 0.0, %v1127
        %1129 = vmatmul.f32.gmra.mxu0 %v1076
        %v1130 = vpop.f32.mrf.mxu0
        %v1131 = vadd.f32 0.0, %v1130
        %1132 = vmatmul.f32.gmra.mxu0 %v1078
        %v1133 = vpop.f32.mrf.mxu0
        %v1134 = vadd.f32 0.0, %v1133
        %1135 = vmatmul.f32.gmra.mxu0 %v1080
        %v1136 = vpop.f32.mrf.mxu0
        %v1137 = vadd.f32 0.0, %v1136
        %1138 = vdwg.mxu0
        %1139 = vset.pattern.permute.xlu0 1
        %1140 = vperm.xlu0 %1139, %v504
        %v1141 = vpop.permute.xlu0 %1140
        %1143 = vset.pattern.permute.xlu0 1
        %1144 = vperm.xlu0 %1143, %v516
        %v1145 = vpop.permute.xlu0 %1144
        %1147 = vset.pattern.permute.xlu0 1
        %1148 = vperm.xlu0 %1147, %v528
        %v1149 = vpop.permute.xlu0 %1148
        %1151 = vset.pattern.permute.xlu0 1
        %1152 = vperm.xlu0 %1151, %v540
        %v1153 = vpop.permute.xlu0 %1152
        %1155 = vset.pattern.permute.xlu0 1
        %1156 = vperm.xlu0 %1155, %v552
        %v1157 = vpop.permute.xlu0 %1156
        %1159 = vset.pattern.permute.xlu0 1
        %1160 = vperm.xlu0 %1159, %v564
        %v1161 = vpop.permute.xlu0 %1160
        %1163 = vset.pattern.permute.xlu0 1
        %1164 = vperm.xlu0 %1163, %v576
        %v1165 = vpop.permute.xlu0 %1164
        %1167 = vset.pattern.permute.xlu0 1
        %1168 = vperm.xlu0 %1167, %v588
        %v1169 = vpop.permute.xlu0 %1168
        %v1171 = vperm.slane %v652, 1
        %v1172 = vmul.f32 %v1141, %v1171
        %v1173 = vmul.f32 %v1145, %v1171
        %v1174 = vmul.f32 %v1149, %v1171
        %v1175 = vmul.f32 %v1153, %v1171
        %v1176 = vmul.f32 %v1157, %v1171
        %v1177 = vmul.f32 %v1161, %v1171
        %v1178 = vmul.f32 %v1165, %v1171
        %v1179 = vmul.f32 %v1169, %v1171
        %v1180 = vadd.f32 %v1172, 0.0001
        %v1181 = vadd.f32 %v1173, 0.0001
        %v1182 = vadd.f32 %v1174, 0.0001
        %v1183 = vadd.f32 %v1175, 0.0001
        %v1184 = vadd.f32 %v1176, 0.0001
        %v1185 = vadd.f32 %v1177, 0.0001
        %v1186 = vadd.f32 %v1178, 0.0001
        %v1187 = vadd.f32 %v1179, 0.0001
        %v1188 = vrcp.pop %v1180
        %v1189 = vmul.f32 %v1180, %v1188
        %v1190 = vsub.f32 1.0, %v1189
        %v1191 = vmul.f32 %v1188, %v1190
        %v1192 = vadd.f32 %v1188, %v1191
        %vm1193 = vweird.f32 %v1180
        %vm1194 = vweird.f32 %v1188
        %vm1195 = vmor %vm1193, %vm1194
        %v1196 = vsel %vm1195, %v1188, %v1192
        %v1197 = vand.u32 2147483647, %v1180
        %vm1198 = vcmp.eq.f32.partialorder %v1197, 8.507059e+37
        %v1199 = vand.u32 %v1180, 2147483648
        %v1200 = vor.u32 1.1754944e-38, %v1199
        %v1201 = vsel %vm1198, %v1200, %v1196
        %v1202 = vmul.f32 %v1116, %v1201
        %v1203 = vrcp.pop %v1181
        %v1204 = vmul.f32 %v1181, %v1203
        %v1205 = vsub.f32 1.0, %v1204
        %v1206 = vmul.f32 %v1203, %v1205
        %v1207 = vadd.f32 %v1203, %v1206
        %vm1208 = vweird.f32 %v1181
        %vm1209 = vweird.f32 %v1203
        %vm1210 = vmor %vm1208, %vm1209
        %v1211 = vsel %vm1210, %v1203, %v1207
        %v1212 = vand.u32 2147483647, %v1181
        %vm1213 = vcmp.eq.f32.partialorder %v1212, 8.507059e+37
        %v1214 = vand.u32 %v1181, 2147483648
        %v1215 = vor.u32 1.1754944e-38, %v1214
        %v1216 = vsel %vm1213, %v1215, %v1211
        %v1217 = vmul.f32 %v1119, %v1216
        %v1218 = vrcp.pop %v1182
        %v1219 = vmul.f32 %v1182, %v1218
        %v1220 = vsub.f32 1.0, %v1219
        %v1221 = vmul.f32 %v1218, %v1220
        %v1222 = vadd.f32 %v1218, %v1221
        %vm1223 = vweird.f32 %v1182
        %vm1224 = vweird.f32 %v1218
        %vm1225 = vmor %vm1223, %vm1224
        %v1226 = vsel %vm1225, %v1218, %v1222
        %v1227 = vand.u32 2147483647, %v1182
        %vm1228 = vcmp.eq.f32.partialorder %v1227, 8.507059e+37
        %v1229 = vand.u32 %v1182, 2147483648
        %v1230 = vor.u32 1.1754944e-38, %v1229
        %v1231 = vsel %vm1228, %v1230, %v1226
        %v1232 = vmul.f32 %v1122, %v1231
        %v1233 = vrcp.pop %v1183
        %v1234 = vmul.f32 %v1183, %v1233
        %v1235 = vsub.f32 1.0, %v1234
        %v1236 = vmul.f32 %v1233, %v1235
        %v1237 = vadd.f32 %v1233, %v1236
        %vm1238 = vweird.f32 %v1183
        %vm1239 = vweird.f32 %v1233
        %vm1240 = vmor %vm1238, %vm1239
        %v1241 = vsel %vm1240, %v1233, %v1237
        %v1242 = vand.u32 2147483647, %v1183
        %vm1243 = vcmp.eq.f32.partialorder %v1242, 8.507059e+37
        %v1244 = vand.u32 %v1183, 2147483648
        %v1245 = vor.u32 1.1754944e-38, %v1244
        %v1246 = vsel %vm1243, %v1245, %v1241
        %v1247 = vmul.f32 %v1125, %v1246
        %v1248 = vrcp.pop %v1184
        %v1249 = vmul.f32 %v1184, %v1248
        %v1250 = vsub.f32 1.0, %v1249
        %v1251 = vmul.f32 %v1248, %v1250
        %v1252 = vadd.f32 %v1248, %v1251
        %vm1253 = vweird.f32 %v1184
        %vm1254 = vweird.f32 %v1248
        %vm1255 = vmor %vm1253, %vm1254
        %v1256 = vsel %vm1255, %v1248, %v1252
        %v1257 = vand.u32 2147483647, %v1184
        %vm1258 = vcmp.eq.f32.partialorder %v1257, 8.507059e+37
        %v1259 = vand.u32 %v1184, 2147483648
        %v1260 = vor.u32 1.1754944e-38, %v1259
        %v1261 = vsel %vm1258, %v1260, %v1256
        %v1262 = vmul.f32 %v1128, %v1261
        %v1263 = vrcp.pop %v1185
        %v1264 = vmul.f32 %v1185, %v1263
        %v1265 = vsub.f32 1.0, %v1264
        %v1266 = vmul.f32 %v1263, %v1265
        %v1267 = vadd.f32 %v1263, %v1266
        %vm1268 = vweird.f32 %v1185
        %vm1269 = vweird.f32 %v1263
        %vm1270 = vmor %vm1268, %vm1269
        %v1271 = vsel %vm1270, %v1263, %v1267
        %v1272 = vand.u32 2147483647, %v1185
        %vm1273 = vcmp.eq.f32.partialorder %v1272, 8.507059e+37
        %v1274 = vand.u32 %v1185, 2147483648
        %v1275 = vor.u32 1.1754944e-38, %v1274
        %v1276 = vsel %vm1273, %v1275, %v1271
        %v1277 = vmul.f32 %v1131, %v1276
        %v1278 = vrcp.pop %v1186
        %v1279 = vmul.f32 %v1186, %v1278
        %v1280 = vsub.f32 1.0, %v1279
        %v1281 = vmul.f32 %v1278, %v1280
        %v1282 = vadd.f32 %v1278, %v1281
        %vm1283 = vweird.f32 %v1186
        %vm1284 = vweird.f32 %v1278
        %vm1285 = vmor %vm1283, %vm1284
        %v1286 = vsel %vm1285, %v1278, %v1282
        %v1287 = vand.u32 2147483647, %v1186
        %vm1288 = vcmp.eq.f32.partialorder %v1287, 8.507059e+37
        %v1289 = vand.u32 %v1186, 2147483648
        %v1290 = vor.u32 1.1754944e-38, %v1289
        %v1291 = vsel %vm1288, %v1290, %v1286
        %v1292 = vmul.f32 %v1134, %v1291
        %v1293 = vrcp.pop %v1187
        %v1294 = vmul.f32 %v1187, %v1293
        %v1295 = vsub.f32 1.0, %v1294
        %v1296 = vmul.f32 %v1293, %v1295
        %v1297 = vadd.f32 %v1293, %v1296
        %vm1298 = vweird.f32 %v1187
        %vm1299 = vweird.f32 %v1293
        %vm1300 = vmor %vm1298, %vm1299
        %v1301 = vsel %vm1300, %v1293, %v1297
        %v1302 = vand.u32 2147483647, %v1187
        %vm1303 = vcmp.eq.f32.partialorder %v1302, 8.507059e+37
        %v1304 = vand.u32 %v1187, 2147483648
        %v1305 = vor.u32 1.1754944e-38, %v1304
        %v1306 = vsel %vm1303, %v1305, %v1301
        %v1307 = vmul.f32 %v1137, %v1306
        %s1308 = scalar_lea.vmem [#allocation2], 64
        %v1309 = vld [vmem:[%s1308] sm:$0xff]
        %v1310 = vld [vmem:[%s1308 + $0x8] sm:$0xff]
        %v1311 = vld [vmem:[%s1308 + $0x10] sm:$0xff]
        %v1312 = vld [vmem:[%s1308 + $0x18] sm:$0xff]
        %v1313 = vld [vmem:[%s1308 + $0x20] sm:$0xff]
        %v1314 = vld [vmem:[%s1308 + $0x28] sm:$0xff]
        %v1315 = vld [vmem:[%s1308 + $0x30] sm:$0xff]
        %v1316 = vld [vmem:[%s1308 + $0x38] sm:$0xff]
        %v1317 = vmul.f32 %v1202, %v1309
        %v1318 = vmul.f32 %v1217, %v1310
        %v1319 = vmul.f32 %v1232, %v1311
        %v1320 = vmul.f32 %v1247, %v1312
        %v1321 = vmul.f32 %v1262, %v1313
        %v1322 = vmul.f32 %v1277, %v1314
        %v1323 = vmul.f32 %v1292, %v1315
        %v1324 = vmul.f32 %v1307, %v1316
        %1325 = vrot.lane.b32.xlu0 %v393, 56
        %v1326 = vpop.permute.xlu0 %1325
        %1327 = vrot.lane.b32.xlu0 %v396, 56
        %v1328 = vpop.permute.xlu0 %1327
        %1329 = vrot.lane.b32.xlu0 %v399, 56
        %v1330 = vpop.permute.xlu0 %1329
        %1331 = vrot.lane.b32.xlu0 %v402, 56
        %v1332 = vpop.permute.xlu0 %1331
        %1333 = vrot.lane.b32.xlu0 %v405, 56
        %v1334 = vpop.permute.xlu0 %1333
        %1335 = vrot.lane.b32.xlu0 %v408, 56
        %v1336 = vpop.permute.xlu0 %1335
        %1337 = vrot.lane.b32.xlu0 %v411, 56
        %v1338 = vpop.permute.xlu0 %1337
        %1339 = vrot.lane.b32.xlu0 %v414, 56
        %v1340 = vpop.permute.xlu0 %1339
        %v1350 = vsel %vm968, %v1317, 0
        %v1353 = vsel %vm968, %v1318, 0
        %v1356 = vsel %vm968, %v1319, 0
        %v1359 = vsel %vm968, %v1320, 0
        %v1362 = vsel %vm968, %v1321, 0
        %v1365 = vsel %vm968, %v1322, 0
        %v1368 = vsel %vm968, %v1323, 0
        %v1371 = vsel %vm968, %v1324, 0
        %1373 = vmatpush.msra.mxu0 0.0
        %1374 = vmatpush.msra.mxu0 0.0
        %1375 = vmatpush.msra.mxu0 0.0
        %1376 = vmatpush.msra.mxu0 0.0
        %1377 = vmatpush.msra.mxu0 0.0
        %1378 = vmatpush.msra.mxu0 0.0
        %1379 = vmatpush.msra.mxu0 0.0
        %1380 = vmatpush.msra.mxu0 0.0
        %1381 = vmatpush.msra.mxu0 %v1340
        %1382 = vmatpush.msra.mxu0 %v1338
        %1383 = vmatpush.msra.mxu0 %v1336
        %1384 = vmatpush.msra.mxu0 %v1334
        %1385 = vmatpush.msra.mxu0 %v1332
        %1386 = vmatpush.msra.mxu0 %v1330
        %1387 = vmatpush.msra.mxu0 %v1328
        %1388 = vmatpush.msra.mxu0 %v1326
        %1389 = vmatmul.f32.gmra.mxu0 %v1350
        %v1390 = vpop.f32.mrf.mxu0
        %v1391 = vadd.f32 0.0, %v1390
        %1392 = vmatmul.f32.gmra.mxu0 %v1353
        %v1393 = vpop.f32.mrf.mxu0
        %v1394 = vadd.f32 0.0, %v1393
        %1395 = vmatmul.f32.gmra.mxu0 %v1356
        %v1396 = vpop.f32.mrf.mxu0
        %v1397 = vadd.f32 0.0, %v1396
        %1398 = vmatmul.f32.gmra.mxu0 %v1359
        %v1399 = vpop.f32.mrf.mxu0
        %v1400 = vadd.f32 0.0, %v1399
        %1401 = vmatmul.f32.gmra.mxu0 %v1362
        %v1402 = vpop.f32.mrf.mxu0
        %v1403 = vadd.f32 0.0, %v1402
        %1404 = vmatmul.f32.gmra.mxu0 %v1365
        %v1405 = vpop.f32.mrf.mxu0
        %v1406 = vadd.f32 0.0, %v1405
        %1407 = vmatmul.f32.gmra.mxu0 %v1368
        %v1408 = vpop.f32.mrf.mxu0
        %v1409 = vadd.f32 0.0, %v1408
        %1410 = vmatmul.f32.gmra.mxu0 %v1371
        %v1411 = vpop.f32.mrf.mxu0
        %v1412 = vadd.f32 0.0, %v1411
        %1413 = vdwg.mxu0
        %1414 = vrot.lane.b32.xlu0 %v393, 112
        %v1415 = vpop.permute.xlu0 %1414
        %1416 = vrot.lane.b32.xlu0 %v396, 112
        %v1417 = vpop.permute.xlu0 %1416
        %1418 = vrot.lane.b32.xlu0 %v399, 112
        %v1419 = vpop.permute.xlu0 %1418
        %1420 = vrot.lane.b32.xlu0 %v402, 112
        %v1421 = vpop.permute.xlu0 %1420
        %1422 = vrot.lane.b32.xlu0 %v405, 112
        %v1423 = vpop.permute.xlu0 %1422
        %1424 = vrot.lane.b32.xlu0 %v408, 112
        %v1425 = vpop.permute.xlu0 %1424
        %1426 = vrot.lane.b32.xlu0 %v411, 112
        %v1427 = vpop.permute.xlu0 %1426
        %1428 = vrot.lane.b32.xlu0 %v414, 112
        %v1429 = vpop.permute.xlu0 %1428
        %1430 = vrot.lane.b32.xlu0 %v393, 80
        %v1431 = vpop.permute.xlu0 %1430
        %1432 = vrot.lane.b32.xlu0 %v396, 80
        %v1433 = vpop.permute.xlu0 %1432
        %1434 = vrot.lane.b32.xlu0 %v399, 80
        %v1435 = vpop.permute.xlu0 %1434
        %1436 = vrot.lane.b32.xlu0 %v402, 80
        %v1437 = vpop.permute.xlu0 %1436
        %1438 = vrot.lane.b32.xlu0 %v405, 80
        %v1439 = vpop.permute.xlu0 %1438
        %1440 = vrot.lane.b32.xlu0 %v408, 80
        %v1441 = vpop.permute.xlu0 %1440
        %1442 = vrot.lane.b32.xlu0 %v411, 80
        %v1443 = vpop.permute.xlu0 %1442
        %1444 = vrot.lane.b32.xlu0 %v414, 80
        %v1445 = vpop.permute.xlu0 %1444
        %v1446 = vsel %vm677, %v1415, 0
        %v1448 = vsel %vm677, %v1417, 0
        %v1450 = vsel %vm677, %v1419, 0
        %v1452 = vsel %vm677, %v1421, 0
        %v1454 = vsel %vm677, %v1423, 0
        %v1456 = vsel %vm677, %v1425, 0
        %v1458 = vsel %vm677, %v1427, 0
        %v1460 = vsel %vm677, %v1429, 0
        %v1462 = vsel %vm677, %v1431, 0
        %v1464 = vsel %vm677, %v1433, 0
        %v1466 = vsel %vm677, %v1435, 0
        %v1468 = vsel %vm677, %v1437, 0
        %v1470 = vsel %vm677, %v1439, 0
        %v1472 = vsel %vm677, %v1441, 0
        %v1474 = vsel %vm677, %v1443, 0
        %v1476 = vsel %vm677, %v1445, 0
        %1478 = vmatpush.xpose.msra.mxu0 0.0
        %1479 = vmatpush.xpose.msra.mxu0 0.0
        %1480 = vmatpush.xpose.msra.mxu0 0.0
        %1481 = vmatpush.xpose.msra.mxu0 0.0
        %1482 = vmatpush.xpose.msra.mxu0 0.0
        %1483 = vmatpush.xpose.msra.mxu0 0.0
        %1484 = vmatpush.xpose.msra.mxu0 0.0
        %1485 = vmatpush.xpose.msra.mxu0 0.0
        %1486 = vmatpush.xpose.msra.mxu0 %v1476
        %1487 = vmatpush.xpose.msra.mxu0 %v1474
        %1488 = vmatpush.xpose.msra.mxu0 %v1472
        %1489 = vmatpush.xpose.msra.mxu0 %v1470
        %1490 = vmatpush.xpose.msra.mxu0 %v1468
        %1491 = vmatpush.xpose.msra.mxu0 %v1466
        %1492 = vmatpush.xpose.msra.mxu0 %v1464
        %1493 = vmatpush.xpose.msra.mxu0 %v1462
        %1494 = vmatmul.f32.gmra.mxu0 %v1446
        %v1495 = vpop.f32.mrf.mxu0
        %v1496 = vadd.f32 0.0, %v1495
        %1497 = vmatmul.f32.gmra.mxu0 %v1448
        %v1498 = vpop.f32.mrf.mxu0
        %v1499 = vadd.f32 0.0, %v1498
        %1500 = vmatmul.f32.gmra.mxu0 %v1450
        %v1501 = vpop.f32.mrf.mxu0
        %v1502 = vadd.f32 0.0, %v1501
        %1503 = vmatmul.f32.gmra.mxu0 %v1452
        %v1504 = vpop.f32.mrf.mxu0
        %v1505 = vadd.f32 0.0, %v1504
        %1506 = vmatmul.f32.gmra.mxu0 %v1454
        %v1507 = vpop.f32.mrf.mxu0
        %v1508 = vadd.f32 0.0, %v1507
        %1509 = vmatmul.f32.gmra.mxu0 %v1456
        %v1510 = vpop.f32.mrf.mxu0
        %v1511 = vadd.f32 0.0, %v1510
        %1512 = vmatmul.f32.gmra.mxu0 %v1458
        %v1513 = vpop.f32.mrf.mxu0
        %v1514 = vadd.f32 0.0, %v1513
        %1515 = vmatmul.f32.gmra.mxu0 %v1460
        %v1516 = vpop.f32.mrf.mxu0
        %v1517 = vadd.f32 0.0, %v1516
        %1518 = vdwg.mxu0
        %1519 = vset.pattern.permute.xlu0 2
        %1520 = vperm.xlu0 %1519, %v504
        %v1521 = vpop.permute.xlu0 %1520
        %1523 = vset.pattern.permute.xlu0 2
        %1524 = vperm.xlu0 %1523, %v516
        %v1525 = vpop.permute.xlu0 %1524
        %1527 = vset.pattern.permute.xlu0 2
        %1528 = vperm.xlu0 %1527, %v528
        %v1529 = vpop.permute.xlu0 %1528
        %1531 = vset.pattern.permute.xlu0 2
        %1532 = vperm.xlu0 %1531, %v540
        %v1533 = vpop.permute.xlu0 %1532
        %1535 = vset.pattern.permute.xlu0 2
        %1536 = vperm.xlu0 %1535, %v552
        %v1537 = vpop.permute.xlu0 %1536
        %1539 = vset.pattern.permute.xlu0 2
        %1540 = vperm.xlu0 %1539, %v564
        %v1541 = vpop.permute.xlu0 %1540
        %1543 = vset.pattern.permute.xlu0 2
        %1544 = vperm.xlu0 %1543, %v576
        %v1545 = vpop.permute.xlu0 %1544
        %1547 = vset.pattern.permute.xlu0 2
        %1548 = vperm.xlu0 %1547, %v588
        %v1549 = vpop.permute.xlu0 %1548
        %v1551 = vperm.slane %v652, 2
        %v1552 = vmul.f32 %v1521, %v1551
        %v1553 = vmul.f32 %v1525, %v1551
        %v1554 = vmul.f32 %v1529, %v1551
        %v1555 = vmul.f32 %v1533, %v1551
        %v1556 = vmul.f32 %v1537, %v1551
        %v1557 = vmul.f32 %v1541, %v1551
        %v1558 = vmul.f32 %v1545, %v1551
        %v1559 = vmul.f32 %v1549, %v1551
        %v1560 = vadd.f32 %v1552, 0.0001
        %v1561 = vadd.f32 %v1553, 0.0001
        %v1562 = vadd.f32 %v1554, 0.0001
        %v1563 = vadd.f32 %v1555, 0.0001
        %v1564 = vadd.f32 %v1556, 0.0001
        %v1565 = vadd.f32 %v1557, 0.0001
        %v1566 = vadd.f32 %v1558, 0.0001
        %v1567 = vadd.f32 %v1559, 0.0001
        %v1568 = vrcp.pop %v1560
        %v1569 = vmul.f32 %v1560, %v1568
        %v1570 = vsub.f32 1.0, %v1569
        %v1571 = vmul.f32 %v1568, %v1570
        %v1572 = vadd.f32 %v1568, %v1571
        %vm1573 = vweird.f32 %v1560
        %vm1574 = vweird.f32 %v1568
        %vm1575 = vmor %vm1573, %vm1574
        %v1576 = vsel %vm1575, %v1568, %v1572
        %v1577 = vand.u32 2147483647, %v1560
        %vm1578 = vcmp.eq.f32.partialorder %v1577, 8.507059e+37
        %v1579 = vand.u32 %v1560, 2147483648
        %v1580 = vor.u32 1.1754944e-38, %v1579
        %v1581 = vsel %vm1578, %v1580, %v1576
        %v1582 = vmul.f32 %v1496, %v1581
        %v1583 = vrcp.pop %v1561
        %v1584 = vmul.f32 %v1561, %v1583
        %v1585 = vsub.f32 1.0, %v1584
        %v1586 = vmul.f32 %v1583, %v1585
        %v1587 = vadd.f32 %v1583, %v1586
        %vm1588 = vweird.f32 %v1561
        %vm1589 = vweird.f32 %v1583
        %vm1590 = vmor %vm1588, %vm1589
        %v1591 = vsel %vm1590, %v1583, %v1587
        %v1592 = vand.u32 2147483647, %v1561
        %vm1593 = vcmp.eq.f32.partialorder %v1592, 8.507059e+37
        %v1594 = vand.u32 %v1561, 2147483648
        %v1595 = vor.u32 1.1754944e-38, %v1594
        %v1596 = vsel %vm1593, %v1595, %v1591
        %v1597 = vmul.f32 %v1499, %v1596
        %v1598 = vrcp.pop %v1562
        %v1599 = vmul.f32 %v1562, %v1598
        %v1600 = vsub.f32 1.0, %v1599
        %v1601 = vmul.f32 %v1598, %v1600
        %v1602 = vadd.f32 %v1598, %v1601
        %vm1603 = vweird.f32 %v1562
        %vm1604 = vweird.f32 %v1598
        %vm1605 = vmor %vm1603, %vm1604
        %v1606 = vsel %vm1605, %v1598, %v1602
        %v1607 = vand.u32 2147483647, %v1562
        %vm1608 = vcmp.eq.f32.partialorder %v1607, 8.507059e+37
        %v1609 = vand.u32 %v1562, 2147483648
        %v1610 = vor.u32 1.1754944e-38, %v1609
        %v1611 = vsel %vm1608, %v1610, %v1606
        %v1612 = vmul.f32 %v1502, %v1611
        %v1613 = vrcp.pop %v1563
        %v1614 = vmul.f32 %v1563, %v1613
        %v1615 = vsub.f32 1.0, %v1614
        %v1616 = vmul.f32 %v1613, %v1615
        %v1617 = vadd.f32 %v1613, %v1616
        %vm1618 = vweird.f32 %v1563
        %vm1619 = vweird.f32 %v1613
        %vm1620 = vmor %vm1618, %vm1619
        %v1621 = vsel %vm1620, %v1613, %v1617
        %v1622 = vand.u32 2147483647, %v1563
        %vm1623 = vcmp.eq.f32.partialorder %v1622, 8.507059e+37
        %v1624 = vand.u32 %v1563, 2147483648
        %v1625 = vor.u32 1.1754944e-38, %v1624
        %v1626 = vsel %vm1623, %v1625, %v1621
        %v1627 = vmul.f32 %v1505, %v1626
        %v1628 = vrcp.pop %v1564
        %v1629 = vmul.f32 %v1564, %v1628
        %v1630 = vsub.f32 1.0, %v1629
        %v1631 = vmul.f32 %v1628, %v1630
        %v1632 = vadd.f32 %v1628, %v1631
        %vm1633 = vweird.f32 %v1564
        %vm1634 = vweird.f32 %v1628
        %vm1635 = vmor %vm1633, %vm1634
        %v1636 = vsel %vm1635, %v1628, %v1632
        %v1637 = vand.u32 2147483647, %v1564
        %vm1638 = vcmp.eq.f32.partialorder %v1637, 8.507059e+37
        %v1639 = vand.u32 %v1564, 2147483648
        %v1640 = vor.u32 1.1754944e-38, %v1639
        %v1641 = vsel %vm1638, %v1640, %v1636
        %v1642 = vmul.f32 %v1508, %v1641
        %v1643 = vrcp.pop %v1565
        %v1644 = vmul.f32 %v1565, %v1643
        %v1645 = vsub.f32 1.0, %v1644
        %v1646 = vmul.f32 %v1643, %v1645
        %v1647 = vadd.f32 %v1643, %v1646
        %vm1648 = vweird.f32 %v1565
        %vm1649 = vweird.f32 %v1643
        %vm1650 = vmor %vm1648, %vm1649
        %v1651 = vsel %vm1650, %v1643, %v1647
        %v1652 = vand.u32 2147483647, %v1565
        %vm1653 = vcmp.eq.f32.partialorder %v1652, 8.507059e+37
        %v1654 = vand.u32 %v1565, 2147483648
        %v1655 = vor.u32 1.1754944e-38, %v1654
        %v1656 = vsel %vm1653, %v1655, %v1651
        %v1657 = vmul.f32 %v1511, %v1656
        %v1658 = vrcp.pop %v1566
        %v1659 = vmul.f32 %v1566, %v1658
        %v1660 = vsub.f32 1.0, %v1659
        %v1661 = vmul.f32 %v1658, %v1660
        %v1662 = vadd.f32 %v1658, %v1661
        %vm1663 = vweird.f32 %v1566
        %vm1664 = vweird.f32 %v1658
        %vm1665 = vmor %vm1663, %vm1664
        %v1666 = vsel %vm1665, %v1658, %v1662
        %v1667 = vand.u32 2147483647, %v1566
        %vm1668 = vcmp.eq.f32.partialorder %v1667, 8.507059e+37
        %v1669 = vand.u32 %v1566, 2147483648
        %v1670 = vor.u32 1.1754944e-38, %v1669
        %v1671 = vsel %vm1668, %v1670, %v1666
        %v1672 = vmul.f32 %v1514, %v1671
        %v1673 = vrcp.pop %v1567
        %v1674 = vmul.f32 %v1567, %v1673
        %v1675 = vsub.f32 1.0, %v1674
        %v1676 = vmul.f32 %v1673, %v1675
        %v1677 = vadd.f32 %v1673, %v1676
        %vm1678 = vweird.f32 %v1567
        %vm1679 = vweird.f32 %v1673
        %vm1680 = vmor %vm1678, %vm1679
        %v1681 = vsel %vm1680, %v1673, %v1677
        %v1682 = vand.u32 2147483647, %v1567
        %vm1683 = vcmp.eq.f32.partialorder %v1682, 8.507059e+37
        %v1684 = vand.u32 %v1567, 2147483648
        %v1685 = vor.u32 1.1754944e-38, %v1684
        %v1686 = vsel %vm1683, %v1685, %v1681
        %v1687 = vmul.f32 %v1517, %v1686
        %s1688 = scalar_lea.vmem [#allocation2], 128
        %v1689 = vld [vmem:[%s1688] sm:$0xff]
        %v1690 = vld [vmem:[%s1688 + $0x8] sm:$0xff]
        %v1691 = vld [vmem:[%s1688 + $0x10] sm:$0xff]
        %v1692 = vld [vmem:[%s1688 + $0x18] sm:$0xff]
        %v1693 = vld [vmem:[%s1688 + $0x20] sm:$0xff]
        %v1694 = vld [vmem:[%s1688 + $0x28] sm:$0xff]
        %v1695 = vld [vmem:[%s1688 + $0x30] sm:$0xff]
        %v1696 = vld [vmem:[%s1688 + $0x38] sm:$0xff]
        %v1697 = vmul.f32 %v1582, %v1689
        %v1698 = vmul.f32 %v1597, %v1690
        %v1699 = vmul.f32 %v1612, %v1691
        %v1700 = vmul.f32 %v1627, %v1692
        %v1701 = vmul.f32 %v1642, %v1693
        %v1702 = vmul.f32 %v1657, %v1694
        %v1703 = vmul.f32 %v1672, %v1695
        %v1704 = vmul.f32 %v1687, %v1696
        %1705 = vrot.lane.b32.xlu0 %v393, 48
        %v1706 = vpop.permute.xlu0 %1705
        %1707 = vrot.lane.b32.xlu0 %v396, 48
        %v1708 = vpop.permute.xlu0 %1707
        %1709 = vrot.lane.b32.xlu0 %v399, 48
        %v1710 = vpop.permute.xlu0 %1709
        %1711 = vrot.lane.b32.xlu0 %v402, 48
        %v1712 = vpop.permute.xlu0 %1711
        %1713 = vrot.lane.b32.xlu0 %v405, 48
        %v1714 = vpop.permute.xlu0 %1713
        %1715 = vrot.lane.b32.xlu0 %v408, 48
        %v1716 = vpop.permute.xlu0 %1715
        %1717 = vrot.lane.b32.xlu0 %v411, 48
        %v1718 = vpop.permute.xlu0 %1717
        %1719 = vrot.lane.b32.xlu0 %v414, 48
        %v1720 = vpop.permute.xlu0 %1719
        %v1730 = vsel %vm968, %v1697, 0
        %v1733 = vsel %vm968, %v1698, 0
        %v1736 = vsel %vm968, %v1699, 0
        %v1739 = vsel %vm968, %v1700, 0
        %v1742 = vsel %vm968, %v1701, 0
        %v1745 = vsel %vm968, %v1702, 0
        %v1748 = vsel %vm968, %v1703, 0
        %v1751 = vsel %vm968, %v1704, 0
        %1753 = vmatpush.msra.mxu0 0.0
        %1754 = vmatpush.msra.mxu0 0.0
        %1755 = vmatpush.msra.mxu0 0.0
        %1756 = vmatpush.msra.mxu0 0.0
        %1757 = vmatpush.msra.mxu0 0.0
        %1758 = vmatpush.msra.mxu0 0.0
        %1759 = vmatpush.msra.mxu0 0.0
        %1760 = vmatpush.msra.mxu0 0.0
        %1761 = vmatpush.msra.mxu0 %v1720
        %1762 = vmatpush.msra.mxu0 %v1718
        %1763 = vmatpush.msra.mxu0 %v1716
        %1764 = vmatpush.msra.mxu0 %v1714
        %1765 = vmatpush.msra.mxu0 %v1712
        %1766 = vmatpush.msra.mxu0 %v1710
        %1767 = vmatpush.msra.mxu0 %v1708
        %1768 = vmatpush.msra.mxu0 %v1706
        %1769 = vmatmul.f32.gmra.mxu0 %v1730
        %v1770 = vpop.f32.mrf.mxu0
        %v1771 = vadd.f32 0.0, %v1770
        %1772 = vmatmul.f32.gmra.mxu0 %v1733
        %v1773 = vpop.f32.mrf.mxu0
        %v1774 = vadd.f32 0.0, %v1773
        %1775 = vmatmul.f32.gmra.mxu0 %v1736
        %v1776 = vpop.f32.mrf.mxu0
        %v1777 = vadd.f32 0.0, %v1776
        %1778 = vmatmul.f32.gmra.mxu0 %v1739
        %v1779 = vpop.f32.mrf.mxu0
        %v1780 = vadd.f32 0.0, %v1779
        %1781 = vmatmul.f32.gmra.mxu0 %v1742
        %v1782 = vpop.f32.mrf.mxu0
        %v1783 = vadd.f32 0.0, %v1782
        %1784 = vmatmul.f32.gmra.mxu0 %v1745
        %v1785 = vpop.f32.mrf.mxu0
        %v1786 = vadd.f32 0.0, %v1785
        %1787 = vmatmul.f32.gmra.mxu0 %v1748
        %v1788 = vpop.f32.mrf.mxu0
        %v1789 = vadd.f32 0.0, %v1788
        %1790 = vmatmul.f32.gmra.mxu0 %v1751
        %v1791 = vpop.f32.mrf.mxu0
        %v1792 = vadd.f32 0.0, %v1791
        %1793 = vdwg.mxu0
        %1794 = vrot.lane.b32.xlu0 %v393, 104
        %v1795 = vpop.permute.xlu0 %1794
        %1796 = vrot.lane.b32.xlu0 %v396, 104
        %v1797 = vpop.permute.xlu0 %1796
        %1798 = vrot.lane.b32.xlu0 %v399, 104
        %v1799 = vpop.permute.xlu0 %1798
        %1800 = vrot.lane.b32.xlu0 %v402, 104
        %v1801 = vpop.permute.xlu0 %1800
        %1802 = vrot.lane.b32.xlu0 %v405, 104
        %v1803 = vpop.permute.xlu0 %1802
        %1804 = vrot.lane.b32.xlu0 %v408, 104
        %v1805 = vpop.permute.xlu0 %1804
        %1806 = vrot.lane.b32.xlu0 %v411, 104
        %v1807 = vpop.permute.xlu0 %1806
        %1808 = vrot.lane.b32.xlu0 %v414, 104
        %v1809 = vpop.permute.xlu0 %1808
        %1810 = vrot.lane.b32.xlu0 %v393, 72
        %v1811 = vpop.permute.xlu0 %1810
        %1812 = vrot.lane.b32.xlu0 %v396, 72
        %v1813 = vpop.permute.xlu0 %1812
        %1814 = vrot.lane.b32.xlu0 %v399, 72
        %v1815 = vpop.permute.xlu0 %1814
        %1816 = vrot.lane.b32.xlu0 %v402, 72
        %v1817 = vpop.permute.xlu0 %1816
        %1818 = vrot.lane.b32.xlu0 %v405, 72
        %v1819 = vpop.permute.xlu0 %1818
        %1820 = vrot.lane.b32.xlu0 %v408, 72
        %v1821 = vpop.permute.xlu0 %1820
        %1822 = vrot.lane.b32.xlu0 %v411, 72
        %v1823 = vpop.permute.xlu0 %1822
        %1824 = vrot.lane.b32.xlu0 %v414, 72
        %v1825 = vpop.permute.xlu0 %1824
        %v1826 = vsel %vm677, %v1795, 0
        %v1828 = vsel %vm677, %v1797, 0
        %v1830 = vsel %vm677, %v1799, 0
        %v1832 = vsel %vm677, %v1801, 0
        %v1834 = vsel %vm677, %v1803, 0
        %v1836 = vsel %vm677, %v1805, 0
        %v1838 = vsel %vm677, %v1807, 0
        %v1840 = vsel %vm677, %v1809, 0
        %v1842 = vsel %vm677, %v1811, 0
        %v1844 = vsel %vm677, %v1813, 0
        %v1846 = vsel %vm677, %v1815, 0
        %v1848 = vsel %vm677, %v1817, 0
        %v1850 = vsel %vm677, %v1819, 0
        %v1852 = vsel %vm677, %v1821, 0
        %v1854 = vsel %vm677, %v1823, 0
        %v1856 = vsel %vm677, %v1825, 0
        %1858 = vmatpush.xpose.msra.mxu0 0.0
        %1859 = vmatpush.xpose.msra.mxu0 0.0
        %1860 = vmatpush.xpose.msra.mxu0 0.0
        %1861 = vmatpush.xpose.msra.mxu0 0.0
        %1862 = vmatpush.xpose.msra.mxu0 0.0
        %1863 = vmatpush.xpose.msra.mxu0 0.0
        %1864 = vmatpush.xpose.msra.mxu0 0.0
        %1865 = vmatpush.xpose.msra.mxu0 0.0
        %1866 = vmatpush.xpose.msra.mxu0 %v1856
        %1867 = vmatpush.xpose.msra.mxu0 %v1854
        %1868 = vmatpush.xpose.msra.mxu0 %v1852
        %1869 = vmatpush.xpose.msra.mxu0 %v1850
        %1870 = vmatpush.xpose.msra.mxu0 %v1848
        %1871 = vmatpush.xpose.msra.mxu0 %v1846
        %1872 = vmatpush.xpose.msra.mxu0 %v1844
        %1873 = vmatpush.xpose.msra.mxu0 %v1842
        %1874 = vmatmul.f32.gmra.mxu0 %v1826
        %v1875 = vpop.f32.mrf.mxu0
        %v1876 = vadd.f32 0.0, %v1875
        %1877 = vmatmul.f32.gmra.mxu0 %v1828
        %v1878 = vpop.f32.mrf.mxu0
        %v1879 = vadd.f32 0.0, %v1878
        %1880 = vmatmul.f32.gmra.mxu0 %v1830
        %v1881 = vpop.f32.mrf.mxu0
        %v1882 = vadd.f32 0.0, %v1881
        %1883 = vmatmul.f32.gmra.mxu0 %v1832
        %v1884 = vpop.f32.mrf.mxu0
        %v1885 = vadd.f32 0.0, %v1884
        %1886 = vmatmul.f32.gmra.mxu0 %v1834
        %v1887 = vpop.f32.mrf.mxu0
        %v1888 = vadd.f32 0.0, %v1887
        %1889 = vmatmul.f32.gmra.mxu0 %v1836
        %v1890 = vpop.f32.mrf.mxu0
        %v1891 = vadd.f32 0.0, %v1890
        %1892 = vmatmul.f32.gmra.mxu0 %v1838
        %v1893 = vpop.f32.mrf.mxu0
        %v1894 = vadd.f32 0.0, %v1893
        %1895 = vmatmul.f32.gmra.mxu0 %v1840
        %v1896 = vpop.f32.mrf.mxu0
        %v1897 = vadd.f32 0.0, %v1896
        %1898 = vdwg.mxu0
        %1899 = vset.pattern.permute.xlu0 3
        %1900 = vperm.xlu0 %1899, %v504
        %v1901 = vpop.permute.xlu0 %1900
        %1903 = vset.pattern.permute.xlu0 3
        %1904 = vperm.xlu0 %1903, %v516
        %v1905 = vpop.permute.xlu0 %1904
        %1907 = vset.pattern.permute.xlu0 3
        %1908 = vperm.xlu0 %1907, %v528
        %v1909 = vpop.permute.xlu0 %1908
        %1911 = vset.pattern.permute.xlu0 3
        %1912 = vperm.xlu0 %1911, %v540
        %v1913 = vpop.permute.xlu0 %1912
        %1915 = vset.pattern.permute.xlu0 3
        %1916 = vperm.xlu0 %1915, %v552
        %v1917 = vpop.permute.xlu0 %1916
        %1919 = vset.pattern.permute.xlu0 3
        %1920 = vperm.xlu0 %1919, %v564
        %v1921 = vpop.permute.xlu0 %1920
        %1923 = vset.pattern.permute.xlu0 3
        %1924 = vperm.xlu0 %1923, %v576
        %v1925 = vpop.permute.xlu0 %1924
        %1927 = vset.pattern.permute.xlu0 3
        %1928 = vperm.xlu0 %1927, %v588
        %v1929 = vpop.permute.xlu0 %1928
        %v1931 = vperm.slane %v652, 3
        %v1932 = vmul.f32 %v1901, %v1931
        %v1933 = vmul.f32 %v1905, %v1931
        %v1934 = vmul.f32 %v1909, %v1931
        %v1935 = vmul.f32 %v1913, %v1931
        %v1936 = vmul.f32 %v1917, %v1931
        %v1937 = vmul.f32 %v1921, %v1931
        %v1938 = vmul.f32 %v1925, %v1931
        %v1939 = vmul.f32 %v1929, %v1931
        %v1940 = vadd.f32 %v1932, 0.0001
        %v1941 = vadd.f32 %v1933, 0.0001
        %v1942 = vadd.f32 %v1934, 0.0001
        %v1943 = vadd.f32 %v1935, 0.0001
        %v1944 = vadd.f32 %v1936, 0.0001
        %v1945 = vadd.f32 %v1937, 0.0001
        %v1946 = vadd.f32 %v1938, 0.0001
        %v1947 = vadd.f32 %v1939, 0.0001
        %v1948 = vrcp.pop %v1940
        %v1949 = vmul.f32 %v1940, %v1948
        %v1950 = vsub.f32 1.0, %v1949
        %v1951 = vmul.f32 %v1948, %v1950
        %v1952 = vadd.f32 %v1948, %v1951
        %vm1953 = vweird.f32 %v1940
        %vm1954 = vweird.f32 %v1948
        %vm1955 = vmor %vm1953, %vm1954
        %v1956 = vsel %vm1955, %v1948, %v1952
        %v1957 = vand.u32 2147483647, %v1940
        %vm1958 = vcmp.eq.f32.partialorder %v1957, 8.507059e+37
        %v1959 = vand.u32 %v1940, 2147483648
        %v1960 = vor.u32 1.1754944e-38, %v1959
        %v1961 = vsel %vm1958, %v1960, %v1956
        %v1962 = vmul.f32 %v1876, %v1961
        %v1963 = vrcp.pop %v1941
        %v1964 = vmul.f32 %v1941, %v1963
        %v1965 = vsub.f32 1.0, %v1964
        %v1966 = vmul.f32 %v1963, %v1965
        %v1967 = vadd.f32 %v1963, %v1966
        %vm1968 = vweird.f32 %v1941
        %vm1969 = vweird.f32 %v1963
        %vm1970 = vmor %vm1968, %vm1969
        %v1971 = vsel %vm1970, %v1963, %v1967
        %v1972 = vand.u32 2147483647, %v1941
        %vm1973 = vcmp.eq.f32.partialorder %v1972, 8.507059e+37
        %v1974 = vand.u32 %v1941, 2147483648
        %v1975 = vor.u32 1.1754944e-38, %v1974
        %v1976 = vsel %vm1973, %v1975, %v1971
        %v1977 = vmul.f32 %v1879, %v1976
        %v1978 = vrcp.pop %v1942
        %v1979 = vmul.f32 %v1942, %v1978
        %v1980 = vsub.f32 1.0, %v1979
        %v1981 = vmul.f32 %v1978, %v1980
        %v1982 = vadd.f32 %v1978, %v1981
        %vm1983 = vweird.f32 %v1942
        %vm1984 = vweird.f32 %v1978
        %vm1985 = vmor %vm1983, %vm1984
        %v1986 = vsel %vm1985, %v1978, %v1982
        %v1987 = vand.u32 2147483647, %v1942
        %vm1988 = vcmp.eq.f32.partialorder %v1987, 8.507059e+37
        %v1989 = vand.u32 %v1942, 2147483648
        %v1990 = vor.u32 1.1754944e-38, %v1989
        %v1991 = vsel %vm1988, %v1990, %v1986
        %v1992 = vmul.f32 %v1882, %v1991
        %v1993 = vrcp.pop %v1943
        %v1994 = vmul.f32 %v1943, %v1993
        %v1995 = vsub.f32 1.0, %v1994
        %v1996 = vmul.f32 %v1993, %v1995
        %v1997 = vadd.f32 %v1993, %v1996
        %vm1998 = vweird.f32 %v1943
        %vm1999 = vweird.f32 %v1993
        %vm2000 = vmor %vm1998, %vm1999
        %v2001 = vsel %vm2000, %v1993, %v1997
        %v2002 = vand.u32 2147483647, %v1943
        %vm2003 = vcmp.eq.f32.partialorder %v2002, 8.507059e+37
        %v2004 = vand.u32 %v1943, 2147483648
        %v2005 = vor.u32 1.1754944e-38, %v2004
        %v2006 = vsel %vm2003, %v2005, %v2001
        %v2007 = vmul.f32 %v1885, %v2006
        %v2008 = vrcp.pop %v1944
        %v2009 = vmul.f32 %v1944, %v2008
        %v2010 = vsub.f32 1.0, %v2009
        %v2011 = vmul.f32 %v2008, %v2010
        %v2012 = vadd.f32 %v2008, %v2011
        %vm2013 = vweird.f32 %v1944
        %vm2014 = vweird.f32 %v2008
        %vm2015 = vmor %vm2013, %vm2014
        %v2016 = vsel %vm2015, %v2008, %v2012
        %v2017 = vand.u32 2147483647, %v1944
        %vm2018 = vcmp.eq.f32.partialorder %v2017, 8.507059e+37
        %v2019 = vand.u32 %v1944, 2147483648
        %v2020 = vor.u32 1.1754944e-38, %v2019
        %v2021 = vsel %vm2018, %v2020, %v2016
        %v2022 = vmul.f32 %v1888, %v2021
        %v2023 = vrcp.pop %v1945
        %v2024 = vmul.f32 %v1945, %v2023
        %v2025 = vsub.f32 1.0, %v2024
        %v2026 = vmul.f32 %v2023, %v2025
        %v2027 = vadd.f32 %v2023, %v2026
        %vm2028 = vweird.f32 %v1945
        %vm2029 = vweird.f32 %v2023
        %vm2030 = vmor %vm2028, %vm2029
        %v2031 = vsel %vm2030, %v2023, %v2027
        %v2032 = vand.u32 2147483647, %v1945
        %vm2033 = vcmp.eq.f32.partialorder %v2032, 8.507059e+37
        %v2034 = vand.u32 %v1945, 2147483648
        %v2035 = vor.u32 1.1754944e-38, %v2034
        %v2036 = vsel %vm2033, %v2035, %v2031
        %v2037 = vmul.f32 %v1891, %v2036
        %v2038 = vrcp.pop %v1946
        %v2039 = vmul.f32 %v1946, %v2038
        %v2040 = vsub.f32 1.0, %v2039
        %v2041 = vmul.f32 %v2038, %v2040
        %v2042 = vadd.f32 %v2038, %v2041
        %vm2043 = vweird.f32 %v1946
        %vm2044 = vweird.f32 %v2038
        %vm2045 = vmor %vm2043, %vm2044
        %v2046 = vsel %vm2045, %v2038, %v2042
        %v2047 = vand.u32 2147483647, %v1946
        %vm2048 = vcmp.eq.f32.partialorder %v2047, 8.507059e+37
        %v2049 = vand.u32 %v1946, 2147483648
        %v2050 = vor.u32 1.1754944e-38, %v2049
        %v2051 = vsel %vm2048, %v2050, %v2046
        %v2052 = vmul.f32 %v1894, %v2051
        %v2053 = vrcp.pop %v1947
        %v2054 = vmul.f32 %v1947, %v2053
        %v2055 = vsub.f32 1.0, %v2054
        %v2056 = vmul.f32 %v2053, %v2055
        %v2057 = vadd.f32 %v2053, %v2056
        %vm2058 = vweird.f32 %v1947
        %vm2059 = vweird.f32 %v2053
        %vm2060 = vmor %vm2058, %vm2059
        %v2061 = vsel %vm2060, %v2053, %v2057
        %v2062 = vand.u32 2147483647, %v1947
        %vm2063 = vcmp.eq.f32.partialorder %v2062, 8.507059e+37
        %v2064 = vand.u32 %v1947, 2147483648
        %v2065 = vor.u32 1.1754944e-38, %v2064
        %v2066 = vsel %vm2063, %v2065, %v2061
        %v2067 = vmul.f32 %v1897, %v2066
        %s2068 = scalar_lea.vmem [#allocation2], 192
        %v2069 = vld [vmem:[%s2068] sm:$0xff]
        %v2070 = vld [vmem:[%s2068 + $0x8] sm:$0xff]
        %v2071 = vld [vmem:[%s2068 + $0x10] sm:$0xff]
        %v2072 = vld [vmem:[%s2068 + $0x18] sm:$0xff]
        %v2073 = vld [vmem:[%s2068 + $0x20] sm:$0xff]
        %v2074 = vld [vmem:[%s2068 + $0x28] sm:$0xff]
        %v2075 = vld [vmem:[%s2068 + $0x30] sm:$0xff]
        %v2076 = vld [vmem:[%s2068 + $0x38] sm:$0xff]
        %v2077 = vmul.f32 %v1962, %v2069
        %v2078 = vmul.f32 %v1977, %v2070
        %v2079 = vmul.f32 %v1992, %v2071
        %v2080 = vmul.f32 %v2007, %v2072
        %v2081 = vmul.f32 %v2022, %v2073
        %v2082 = vmul.f32 %v2037, %v2074
        %v2083 = vmul.f32 %v2052, %v2075
        %v2084 = vmul.f32 %v2067, %v2076
        %2085 = vrot.lane.b32.xlu0 %v393, 40
        %v2086 = vpop.permute.xlu0 %2085
        %2087 = vrot.lane.b32.xlu0 %v396, 40
        %v2088 = vpop.permute.xlu0 %2087
        %2089 = vrot.lane.b32.xlu0 %v399, 40
        %v2090 = vpop.permute.xlu0 %2089
        %2091 = vrot.lane.b32.xlu0 %v402, 40
        %v2092 = vpop.permute.xlu0 %2091
        %2093 = vrot.lane.b32.xlu0 %v405, 40
        %v2094 = vpop.permute.xlu0 %2093
        %2095 = vrot.lane.b32.xlu0 %v408, 40
        %v2096 = vpop.permute.xlu0 %2095
        %2097 = vrot.lane.b32.xlu0 %v411, 40
        %v2098 = vpop.permute.xlu0 %2097
        %2099 = vrot.lane.b32.xlu0 %v414, 40
        %v2100 = vpop.permute.xlu0 %2099
        %v2110 = vsel %vm968, %v2077, 0
        %v2113 = vsel %vm968, %v2078, 0
        %v2116 = vsel %vm968, %v2079, 0
        %v2119 = vsel %vm968, %v2080, 0
        %v2122 = vsel %vm968, %v2081, 0
        %v2125 = vsel %vm968, %v2082, 0
        %v2128 = vsel %vm968, %v2083, 0
        %v2131 = vsel %vm968, %v2084, 0
        %2133 = vmatpush.msra.mxu0 0.0
        %2134 = vmatpush.msra.mxu0 0.0
        %2135 = vmatpush.msra.mxu0 0.0
        %2136 = vmatpush.msra.mxu0 0.0
        %2137 = vmatpush.msra.mxu0 0.0
        %2138 = vmatpush.msra.mxu0 0.0
        %2139 = vmatpush.msra.mxu0 0.0
        %2140 = vmatpush.msra.mxu0 0.0
        %2141 = vmatpush.msra.mxu0 %v2100
        %2142 = vmatpush.msra.mxu0 %v2098
        %2143 = vmatpush.msra.mxu0 %v2096
        %2144 = vmatpush.msra.mxu0 %v2094
        %2145 = vmatpush.msra.mxu0 %v2092
        %2146 = vmatpush.msra.mxu0 %v2090
        %2147 = vmatpush.msra.mxu0 %v2088
        %2148 = vmatpush.msra.mxu0 %v2086
        %2149 = vmatmul.f32.gmra.mxu0 %v2110
        %v2150 = vpop.f32.mrf.mxu0
        %v2151 = vadd.f32 0.0, %v2150
        %2152 = vmatmul.f32.gmra.mxu0 %v2113
        %v2153 = vpop.f32.mrf.mxu0
        %v2154 = vadd.f32 0.0, %v2153
        %2155 = vmatmul.f32.gmra.mxu0 %v2116
        %v2156 = vpop.f32.mrf.mxu0
        %v2157 = vadd.f32 0.0, %v2156
        %2158 = vmatmul.f32.gmra.mxu0 %v2119
        %v2159 = vpop.f32.mrf.mxu0
        %v2160 = vadd.f32 0.0, %v2159
        %2161 = vmatmul.f32.gmra.mxu0 %v2122
        %v2162 = vpop.f32.mrf.mxu0
        %v2163 = vadd.f32 0.0, %v2162
        %2164 = vmatmul.f32.gmra.mxu0 %v2125
        %v2165 = vpop.f32.mrf.mxu0
        %v2166 = vadd.f32 0.0, %v2165
        %2167 = vmatmul.f32.gmra.mxu0 %v2128
        %v2168 = vpop.f32.mrf.mxu0
        %v2169 = vadd.f32 0.0, %v2168
        %2170 = vmatmul.f32.gmra.mxu0 %v2131
        %v2171 = vpop.f32.mrf.mxu0
        %v2172 = vadd.f32 0.0, %v2171
        %2173 = vdwg.mxu0
        %2174 = vrot.lane.b32.xlu0 %v1317, 64
        %v2175 = vpop.permute.xlu0 %2174
        %2176 = vrot.lane.b32.xlu0 %v1318, 64
        %v2177 = vpop.permute.xlu0 %2176
        %2178 = vrot.lane.b32.xlu0 %v1319, 64
        %v2179 = vpop.permute.xlu0 %2178
        %2180 = vrot.lane.b32.xlu0 %v1320, 64
        %v2181 = vpop.permute.xlu0 %2180
        %2182 = vrot.lane.b32.xlu0 %v1321, 64
        %v2183 = vpop.permute.xlu0 %2182
        %2184 = vrot.lane.b32.xlu0 %v1322, 64
        %v2185 = vpop.permute.xlu0 %2184
        %2186 = vrot.lane.b32.xlu0 %v1323, 64
        %v2187 = vpop.permute.xlu0 %2186
        %2188 = vrot.lane.b32.xlu0 %v1324, 64
        %v2189 = vpop.permute.xlu0 %2188
        %2198 = vrot.lane.b32.xlu0 %v2077, 64
        %v2199 = vpop.permute.xlu0 %2198
        %2200 = vrot.lane.b32.xlu0 %v2078, 64
        %v2201 = vpop.permute.xlu0 %2200
        %2202 = vrot.lane.b32.xlu0 %v2079, 64
        %v2203 = vpop.permute.xlu0 %2202
        %2204 = vrot.lane.b32.xlu0 %v2080, 64
        %v2205 = vpop.permute.xlu0 %2204
        %2206 = vrot.lane.b32.xlu0 %v2081, 64
        %v2207 = vpop.permute.xlu0 %2206
        %2208 = vrot.lane.b32.xlu0 %v2082, 64
        %v2209 = vpop.permute.xlu0 %2208
        %2210 = vrot.lane.b32.xlu0 %v2083, 64
        %v2211 = vpop.permute.xlu0 %2210
        %2212 = vrot.lane.b32.xlu0 %v2084, 64
        %v2213 = vpop.permute.xlu0 %2212
        %v2222 = vsel %vm968, %v936, %v2175
        %v2223 = vsel %vm968, %v937, %v2177
        %v2224 = vsel %vm968, %v938, %v2179
        %v2225 = vsel %vm968, %v939, %v2181
        %v2226 = vsel %vm968, %v940, %v2183
        %v2227 = vsel %vm968, %v941, %v2185
        %v2228 = vsel %vm968, %v942, %v2187
        %v2229 = vsel %vm968, %v943, %v2189
        %v2230 = vsel %vm968, %v1697, %v2199
        %v2231 = vsel %vm968, %v1698, %v2201
        %v2232 = vsel %vm968, %v1699, %v2203
        %v2233 = vsel %vm968, %v1700, %v2205
        %v2234 = vsel %vm968, %v1701, %v2207
        %v2235 = vsel %vm968, %v1702, %v2209
        %v2236 = vsel %vm968, %v1703, %v2211
        %v2237 = vsel %vm968, %v1704, %v2213
        %2238 = vst [vmem:[%s323] sm:$0xff] %v2222
        %2239 = vst [vmem:[%s323 + $0x8] sm:$0xff] %v2230
        %2240 = vst [vmem:[%s323 + $0x10] sm:$0xff] %v2223
        %2241 = vst [vmem:[%s323 + $0x18] sm:$0xff] %v2231
        %2242 = vst [vmem:[%s323 + $0x20] sm:$0xff] %v2224
        %2243 = vst [vmem:[%s323 + $0x28] sm:$0xff] %v2232
        %2244 = vst [vmem:[%s323 + $0x30] sm:$0xff] %v2225
        %2245 = vst [vmem:[%s323 + $0x38] sm:$0xff] %v2233
        %2246 = vst [vmem:[%s323 + $0x40] sm:$0xff] %v2226
        %2247 = vst [vmem:[%s323 + $0x48] sm:$0xff] %v2234
        %2248 = vst [vmem:[%s323 + $0x50] sm:$0xff] %v2227
        %2249 = vst [vmem:[%s323 + $0x58] sm:$0xff] %v2235
        %2250 = vst [vmem:[%s323 + $0x60] sm:$0xff] %v2228
        %2251 = vst [vmem:[%s323 + $0x68] sm:$0xff] %v2236
        %2252 = vst [vmem:[%s323 + $0x70] sm:$0xff] %v2229
        %2253 = vst [vmem:[%s323 + $0x78] sm:$0xff] %v2237
        %2262 = vrot.lane.b32.xlu0 %v1391, 8
        %v2263 = vpop.permute.xlu0 %2262
        %2264 = vrot.lane.b32.xlu0 %v1394, 8
        %v2265 = vpop.permute.xlu0 %2264
        %2266 = vrot.lane.b32.xlu0 %v1397, 8
        %v2267 = vpop.permute.xlu0 %2266
        %2268 = vrot.lane.b32.xlu0 %v1400, 8
        %v2269 = vpop.permute.xlu0 %2268
        %2270 = vrot.lane.b32.xlu0 %v1403, 8
        %v2271 = vpop.permute.xlu0 %2270
        %2272 = vrot.lane.b32.xlu0 %v1406, 8
        %v2273 = vpop.permute.xlu0 %2272
        %2274 = vrot.lane.b32.xlu0 %v1409, 8
        %v2275 = vpop.permute.xlu0 %2274
        %2276 = vrot.lane.b32.xlu0 %v1412, 8
        %v2277 = vpop.permute.xlu0 %2276
        %2294 = vrot.lane.b32.xlu0 %v1771, 16
        %v2295 = vpop.permute.xlu0 %2294
        %2296 = vrot.lane.b32.xlu0 %v1774, 16
        %v2297 = vpop.permute.xlu0 %2296
        %2298 = vrot.lane.b32.xlu0 %v1777, 16
        %v2299 = vpop.permute.xlu0 %2298
        %2300 = vrot.lane.b32.xlu0 %v1780, 16
        %v2301 = vpop.permute.xlu0 %2300
        %2302 = vrot.lane.b32.xlu0 %v1783, 16
        %v2303 = vpop.permute.xlu0 %2302
        %2304 = vrot.lane.b32.xlu0 %v1786, 16
        %v2305 = vpop.permute.xlu0 %2304
        %2306 = vrot.lane.b32.xlu0 %v1789, 16
        %v2307 = vpop.permute.xlu0 %2306
        %2308 = vrot.lane.b32.xlu0 %v1792, 16
        %v2309 = vpop.permute.xlu0 %2308
        %2326 = vrot.lane.b32.xlu0 %v2151, 24
        %v2327 = vpop.permute.xlu0 %2326
        %2328 = vrot.lane.b32.xlu0 %v2154, 24
        %v2329 = vpop.permute.xlu0 %2328
        %2330 = vrot.lane.b32.xlu0 %v2157, 24
        %v2331 = vpop.permute.xlu0 %2330
        %2332 = vrot.lane.b32.xlu0 %v2160, 24
        %v2333 = vpop.permute.xlu0 %2332
        %2334 = vrot.lane.b32.xlu0 %v2163, 24
        %v2335 = vpop.permute.xlu0 %2334
        %2336 = vrot.lane.b32.xlu0 %v2166, 24
        %v2337 = vpop.permute.xlu0 %2336
        %2338 = vrot.lane.b32.xlu0 %v2169, 24
        %v2339 = vpop.permute.xlu0 %2338
        %2340 = vrot.lane.b32.xlu0 %v2172, 24
        %v2341 = vpop.permute.xlu0 %2340
        %v2350 = vsel %vm677, %v1011, %v2263
        %v2351 = vsel %vm677, %v1014, %v2265
        %v2352 = vsel %vm677, %v1017, %v2267
        %v2353 = vsel %vm677, %v1020, %v2269
        %v2354 = vsel %vm677, %v1023, %v2271
        %v2355 = vsel %vm677, %v1026, %v2273
        %v2356 = vsel %vm677, %v1029, %v2275
        %v2357 = vsel %vm677, %v1032, %v2277
        %vm2358 = vcmask 130048
        %v2359 = vsel %vm2358, %v2350, %v2295
        %v2360 = vsel %vm2358, %v2351, %v2297
        %v2361 = vsel %vm2358, %v2352, %v2299
        %v2362 = vsel %vm2358, %v2353, %v2301
        %v2363 = vsel %vm2358, %v2354, %v2303
        %v2364 = vsel %vm2358, %v2355, %v2305
        %v2365 = vsel %vm2358, %v2356, %v2307
        %v2366 = vsel %vm2358, %v2357, %v2309
        %vm2367 = vcmask 195584
        %v2368 = vsel %vm2367, %v2359, %v2327
        %v2369 = vsel %vm2367, %v2360, %v2329
        %v2370 = vsel %vm2367, %v2361, %v2331
        %v2371 = vsel %vm2367, %v2362, %v2333
        %v2372 = vsel %vm2367, %v2363, %v2335
        %v2373 = vsel %vm2367, %v2364, %v2337
        %v2374 = vsel %vm2367, %v2365, %v2339
        %v2375 = vsel %vm2367, %v2366, %v2341
        %v2376 = vld [vmem:[%s3] sm:$0xff]
        %v2377 = vld [vmem:[%s3 + $0x8] sm:$0xff]
        %v2378 = vld [vmem:[%s3 + $0x10] sm:$0xff]
        %v2379 = vld [vmem:[%s3 + $0x18] sm:$0xff]
        %v2380 = vld [vmem:[%s4] sm:$0x1]
        %v2382 = vperm.slane %v2380, 0
        %v2385 = vsel %vm350, %v2368, 0
        %v2388 = vsel %vm350, %v2369, 0
        %v2391 = vsel %vm350, %v2370, 0
        %v2394 = vsel %vm350, %v2371, 0
        %v2397 = vsel %vm350, %v2372, 0
        %v2400 = vsel %vm350, %v2373, 0
        %v2403 = vsel %vm350, %v2374, 0
        %v2406 = vsel %vm350, %v2375, 0
        %2408 = vmatpush.msra.mxu0 0.0
        %2409 = vmatpush.msra.mxu0 0.0
        %2410 = vmatpush.msra.mxu0 0.0
        %2411 = vmatpush.msra.mxu0 0.0
        %2412 = vmatpush.msra.mxu0 0.0
        %2413 = vmatpush.msra.mxu0 0.0
        %2414 = vmatpush.msra.mxu0 0.0
        %2415 = vmatpush.msra.mxu0 0.0
        %2416 = vmatpush.msra.mxu0 0.0
        %2417 = vmatpush.msra.mxu0 0.0
        %2418 = vmatpush.msra.mxu0 0.0
        %2419 = vmatpush.msra.mxu0 0.0
        %2420 = vmatpush.msra.mxu0 %v2379
        %2421 = vmatpush.msra.mxu0 %v2378
        %2422 = vmatpush.msra.mxu0 %v2377
        %2423 = vmatpush.msra.mxu0 %v2376
        %2424 = vmatmul.f32.gmra.mxu0 %v2385
        %v2425 = vpop.f32.mrf.mxu0
        %v2426 = vadd.f32 %v2382, %v2425
        %2427 = vmatmul.f32.gmra.mxu0 %v2388
        %v2428 = vpop.f32.mrf.mxu0
        %v2429 = vadd.f32 %v2382, %v2428
        %2430 = vmatmul.f32.gmra.mxu0 %v2391
        %v2431 = vpop.f32.mrf.mxu0
        %v2432 = vadd.f32 %v2382, %v2431
        %2433 = vmatmul.f32.gmra.mxu0 %v2394
        %v2434 = vpop.f32.mrf.mxu0
        %v2435 = vadd.f32 %v2382, %v2434
        %2436 = vmatmul.f32.gmra.mxu0 %v2397
        %v2437 = vpop.f32.mrf.mxu0
        %v2438 = vadd.f32 %v2382, %v2437
        %2439 = vmatmul.f32.gmra.mxu0 %v2400
        %v2440 = vpop.f32.mrf.mxu0
        %v2441 = vadd.f32 %v2382, %v2440
        %2442 = vmatmul.f32.gmra.mxu0 %v2403
        %v2443 = vpop.f32.mrf.mxu0
        %v2444 = vadd.f32 %v2382, %v2443
        %2445 = vmatmul.f32.gmra.mxu0 %v2406
        %v2446 = vpop.f32.mrf.mxu0
        %v2447 = vadd.f32 %v2382, %v2446
        %2448 = vdwg.mxu0
        %2449 = vst.msk [vmem:[%s333] sm:$0xff] %vm350, %v2426
        %2450 = vst.msk [vmem:[%s333 + $0x8] sm:$0xff] %vm350, %v2429
        %2451 = vst.msk [vmem:[%s333 + $0x10] sm:$0xff] %vm350, %v2432
        %2452 = vst.msk [vmem:[%s333 + $0x18] sm:$0xff] %vm350, %v2435
        %2453 = vst.msk [vmem:[%s333 + $0x20] sm:$0xff] %vm350, %v2438
        %2454 = vst.msk [vmem:[%s333 + $0x28] sm:$0xff] %vm350, %v2441
        %2455 = vst.msk [vmem:[%s333 + $0x30] sm:$0xff] %vm350, %v2444
        %2456 = vst.msk [vmem:[%s333 + $0x38] sm:$0xff] %vm350, %v2447
        %p2457 = scmp.lt.s32.totalorder %s24, 1
        %s2458 = scalar_select %p2457, %s24, 1
        %s2459 = smul.addr %s2458, 8
        %s2460 = smul.addr %s2459, 8
        %s2461 = scalar_lea.vmem %s7, %s2460
        %s2462 = sand.u32 %s210, 1
        %s2463 = scalar_lea.sflag [#allocation4], %s2462
        %s2464 = sand.u32 %s210, 1
        %s2465 = smul.addr %s2464, 128
        %s2466 = scalar_lea.vmem [#allocation5], %s2465
        // Predicated region
        $region53: #{tpu_custom_call.1} parent=47 // pred_check
          %p2467 = pneg %p194
        $region54: #{tpu_custom_call.1} parent=47 // pred_check_branch
          %2469 = sbr.rel (%p2467) target = $region56
        $region55: #{tpu_custom_call.1} parent=47 // pred_region
          _
        $region56: #{tpu_custom_call.1} parent=47 // pred_fallthru
          _
        // Predicated region
        $region57: #{tpu_custom_call.1} parent=47 // pred_check
          %p2470 = pneg %p220
        $region58: #{tpu_custom_call.1} parent=47 // pred_check_branch
          %2472 = sbr.rel (%p2470) target = $region60
        $region59: #{tpu_custom_call.1} parent=47 // pred_region
          %2474 = vsyncadd %s2463, 0
          %s2475 = smul.addr %s24, 16
          %s2476 = smul.addr %s2475, 8
          %s2477 = scalar_lea.hbm %s8, %s2476
          %s2478 = sshll.u32 %s2466, 4
          %s2479 = int_to_ptr.vmem [resolvable:$true] %s2478
          %s2480 = sshll.u32 %s2477, 4
          %s2481 = int_to_ptr.hbm [resolvable:$true] %s2480
          %2486 = dma.vmem_to_hbm [thread:$0]  %s2479, 2048, %s2481, %s2463, 256, 256, 16
        $region60: #{tpu_custom_call.1} parent=47 // pred_fallthru
          _
      $region48: #{tpu_custom_call.1} parent=5 // pred_fallthru
        _
      %p2487 = scmp.le.s32.totalorder 2, %s19
      // Predicated region
      $region61: #{tpu_custom_call.1} parent=5 // pred_check
        %p2488 = pneg %p2487
      $region62: #{tpu_custom_call.1} parent=5 // pred_check_branch
        %2490 = sbr.rel (%p2488) target = $region64
      $region63: #{tpu_custom_call.1} parent=5 // pred_region
        %s2491 = ssub.s32 %s19, 2
        // Predicated region
        $region65: #{tpu_custom_call.1} parent=63 // pred_check
          %p2492 = pneg %p200
        $region66: #{tpu_custom_call.1} parent=63 // pred_check_branch
          %2494 = sbr.rel (%p2492) target = $region68
        $region67: #{tpu_custom_call.1} parent=63 // pred_region
          %p2495 = scmp.lt.s32.totalorder %s25, 1
          %s2496 = scalar_select %p2495, %s25, 1
          %s2497 = smul.addr %s2496, 8
          %s2498 = smul.addr %s2497, 8
          %s2499 = scalar_lea.vmem %s7, %s2498
        $region68: #{tpu_custom_call.1} parent=63 // pred_fallthru
          _
        // Predicated region
        $region69: #{tpu_custom_call.1} parent=63 // pred_check
          %p2500 = pneg %p226
        $region70: #{tpu_custom_call.1} parent=63 // pred_check_branch
          %2502 = sbr.rel (%p2500) target = $region72
        $region71: #{tpu_custom_call.1} parent=63 // pred_region
          %s2503 = sand.u32 %s211, 1
          %s2504 = scalar_lea.sflag [#allocation4], %s2503
          %s2505 = sand.u32 %s211, 1
          %s2506 = smul.addr %s2505, 128
          %s2507 = scalar_lea.vmem [#allocation5], %s2506
          %2509 = dma.done %s2504, 2048
        $region72: #{tpu_custom_call.1} parent=63 // pred_fallthru
          _
      $region64: #{tpu_custom_call.1} parent=5 // pred_fallthru
        _
    $region6: #{tpu_custom_call.1} parent=1 // loop_footer
      %s23 = sadd.s32 1, %s19
    $region7: #{tpu_custom_call.1} parent=1 // loop_footer_branch
      %18 = sbr.rel target = $region3
    $region8: #{tpu_custom_call.1} parent=1 // loop_exit
      _
    %2510 = vsyncpa [#allocation3], 1
    %s2511 = scalar_lea.sflag [#allocation3], 1
    %2512 = vsyncpa %s2511, 1
    %2513 = vsyncpa [#allocation4], 1
    %s2514 = scalar_lea.sflag [#allocation4], 1
    %2515 = vsyncpa %s2514, 1

</llo_original>
